<compile_context>
chip_gen: v7x
topology: tpu7x:2x2x1
jax: 0.10.0
libtpu: 0.0.40
codegen_flags: <defaults>
</compile_context>

<pallas_src>
import jax
import jax.numpy as jnp
from jax import lax
from jax.experimental import pallas as pl
from jax.experimental.pallas import tpu as pltpu


# ---------------------------------------------------------------------------
# packed per-channel parameter columns (one lane-dense (C, 18) array)
# ---------------------------------------------------------------------------
_DWV0, _DWH0, _DWV1, _DWH1 = 0, 3, 6, 9      # 3 depthwise taps each
_PWB0, _PWB1 = 12, 13                         # folded pointwise bias per block
_S4, _B4, _S5, _B5 = 14, 15, 16, 17           # remaining BN affines
_NPARAM = 18


def _erf_approx(z):
    # Abramowitz & Stegun 7.1.26 (|abs err| < 1.5e-7); recip/exp go to the EUP.
    a1, a2, a3, a4, a5 = (0.254829592, -0.284496736, 1.421413741,
                          -1.453152027, 1.061405429)
    p = 0.3275911
    za = jnp.abs(z)
    t = pl.reciprocal(1.0 + p * za)
    poly = ((((a5 * t + a4) * t + a3) * t + a2) * t + a1) * t
    r = 1.0 - poly * jnp.exp(-za * za)
    return jnp.where(z >= 0.0, r, -r)


def _gelu_exact(x):
    # PyTorch nn.GELU() default: 0.5 * x * (1 + erf(x / sqrt(2))).
    # TODO(synk): tanh-form GELU is ~2.5x cheaper on the VALU but drifts ~3e-4
    # from exact erf; kept exact to preserve the module's numerics.
    return 0.5 * x * (1.0 + _erf_approx(x * 0.7071067811865476))


def _make_kernel(C, H, W):
    HW, Ho, Wo = H * W, H // 2, W // 2

    def kernel(x_ref, pw_ref, cp_ref, mask_ref, selw_ref, out_ref):
        # x_ref:    (C, HW)       one batch element, flat lane-dense spatial
        # pw_ref:   (2, C, C)     BN-folded pointwise weights P' (out, in)
        # cp_ref:   (C, 18)       packed per-channel params (taps, biases, BN)
        # mask_ref: (4, HW)       boundary keep-masks [h-1, h+1, w-1, w+1]
        # selw_ref: (W, Wo)       even-column selection for pooling compaction
        # out_ref:  (C, Ho*Wo)
        cp = cp_ref[...]
        masks = mask_ref[...]
        keep_hm = masks[0:1, :]   # row > 0     (h-1 tap valid)
        keep_hp = masks[1:2, :]   # row < H-1   (h+1 tap valid)
        keep_wm = masks[2:3, :]   # col > 0     (w-1 tap valid)
        keep_wp = masks[3:4, :]   # col < W-1   (w+1 tap valid)

        def col(k):               # (C, 1) per-channel scalar, lane-broadcast
            return cp[:, k:k + 1]

        def roll(v, s):           # XLU lane rotate; jnp.roll semantics
            return pltpu.roll(v, s % HW, axis=1)

        def dw_conv(v, base):
            # (3,1) then (1,3) depthwise, cross-correlation, 'same' zero pad.
            t = (col(base + 0) * (roll(v, W) * keep_hm)
                 + col(base + 1) * v
                 + col(base + 2) * (roll(v, -W) * keep_hp))
            return (col(base + 3) * (roll(t, 1) * keep_wm)
                    + col(base + 4) * t
                    + col(base + 5) * (roll(t, -1) * keep_wp))

        def ddsc(v, blk):
            # depthwise -> pointwise 1x1 MXU matmul (+ folded BN bias) -> GELU
            d = dw_conv(v, 6 * blk)
            y = jnp.dot(pw_ref[blk], d, preferred_element_type=jnp.float32)
            return _gelu_exact(y + col(_PWB0 + blk))

        def pairmax(v):
            # max with right / lower neighbour; only even (h, w) entries are
            # consumed downstream, so lane wrap-around never leaks.
            m = jnp.maximum(v, roll(v, -1))
            return jnp.maximum(m, roll(m, -W))

        x = x_ref[...].astype(jnp.float32)

        # DoubleResidualDWSeparableConv2d (Cin == Cout -> identity residual)
        y1 = ddsc(x, 0)
        y2 = ddsc(y1, 1)
        y = col(_S4) * (y2 + x) + col(_B4)

        # ResidualDownsampleSep: outNorm(maxpool(x) + maxpool(conv_block(x))).
        # Even-row select = static slices; even-column select = (W, Wo) matmul.
        pm = pairmax(x) + pairmax(y)
        selw = selw_ref[...]
        rows = []
        for h2 in range(Ho):  # static unroll over output rows
            row = pm[:, 2 * h2 * W:(2 * h2 + 1) * W]                  # (C, W)
            rows.append(jnp.dot(row, selw,
                                preferred_element_type=jnp.float32))  # (C, Wo)
        pooled = jnp.concatenate(rows, axis=1)        # (C, Ho*Wo) lane-dense
        out_ref[...] = (col(_S5) * pooled + col(_B5)).astype(out_ref.dtype)

    return kernel


def _vmem_limit_bytes():
    # Per-generation limit: ~3/4 of physical VMEM (v5e/v6e: 128 MiB, v7x: 64 MiB).
    try:
        cap = int(pltpu.get_tpu_info().vmem_capacity_bytes)
    except Exception:
        cap = 64 * 1024 * 1024
    return int(min(cap * 3 // 4, 100 * 1024 * 1024))


def _const_spec(shape):
    # Revisit-constant operand: same block every grid step -> single-buffer it.
    zeros = (0,) * len(shape)
    try:
        return pl.BlockSpec(shape, lambda n: zeros, pipeline_mode=pl.Buffered(1))
    except Exception:
        return pl.BlockSpec(shape, lambda n: zeros)


@jax.jit
def residual_downsample_sep(x, dwv, dwh, pw, bn_scale, bn_bias):
    """ResidualDownsampleSep forward (eval-mode BatchNorm folded to scale/bias).

    x:        (N, C, H, W)
    dwv, dwh: (2, C, 3)  depthwise (3,1) / (1,3) taps for conv block 0 and 1
    pw:       (2, C, C)  pointwise 1x1 weights (out, in)
    bn_scale, bn_bias: (6, C) folded BN affines, rows:
        [conv1.dwBN, conv1.pwBN, conv2.dwBN, conv2.pwBN,
         DoubleResidual.outNorm, ResidualDownsampleSep.outNorm]
    """
    N, C, H, W = x.shape
    assert H % 2 == 0 and W % 2 == 0, "even spatial dims assumed (MaxPool2d(2,2))"
    HW, Ho, Wo = H * W, H // 2, W // 2
    HWo = Ho * Wo
    f32 = jnp.float32

    dwv = dwv.astype(f32)
    dwh = dwh.astype(f32)
    pw = pw.astype(f32)
    bn_scale = bn_scale.astype(f32)
    bn_bias = bn_bias.astype(f32)

    # --- Fold dw-BN and pw-BN into the pointwise weights and a single bias ---
    #   P' = diag(s_pw) @ P @ diag(s_dw);  b' = s_pw * (P @ b_dw) + b_pw
    s_dw, b_dw = bn_scale[0::2][:2], bn_bias[0::2][:2]    # BN rows 0, 2
    s_pw, b_pw = bn_scale[1::2][:2], bn_bias[1::2][:2]    # BN rows 1, 3
    pw_folded = s_pw[:, :, None] * pw * s_dw[:, None, :]              # (2, C, C)
    pw_bias = s_pw * jnp.einsum('bij,bj->bi', pw, b_dw) + b_pw        # (2, C)

    # --- Pad channels to a sublane multiple (padded channels stay exactly 0) ---
    Cp = -(-C // 8) * 8
    pad_c = Cp - C

    def padc(a, axes):
        if pad_c == 0:
            return a
        widths = [(0, 0)] * a.ndim
        for ax in axes:
            widths[ax] = (0, pad_c)
        return jnp.pad(a, widths)

    x_flat = padc(x, (1,)).reshape(N, Cp, HW)
    pw_p = padc(pw_folded, (1, 2))                                    # (2, Cp, Cp)

    # --- Pack all per-channel scalars into one lane-dense (Cp, 18) array ---
    cparams = jnp.concatenate([
        padc(dwv[0], (0,)), padc(dwh[0], (0,)),                       # cols 0..5
        padc(dwv[1], (0,)), padc(dwh[1], (0,)),                       # cols 6..11
        padc(pw_bias[0][:, None], (0,)), padc(pw_bias[1][:, None], (0,)),
        padc(bn_scale[4][:, None], (0,)), padc(bn_bias[4][:, None], (0,)),
        padc(bn_scale[5][:, None], (0,)), padc(bn_bias[5][:, None], (0,)),
    ], axis=1)                                                        # (Cp, 18)

    # --- Boundary keep-masks for the shifted depthwise taps (flat layout) ---
    idx = jnp.arange(HW)
    rr, cc = idx // W, idx % W
    masks = jnp.stack([(rr > 0), (rr < H - 1),
                       (cc > 0), (cc < W - 1)]).astype(f32)           # (4, HW)

    # --- Even-column selection for the 2x2 pooling compaction: O(W^2) only ---
    selw = (jnp.arange(W)[:, None] == 2 * jnp.arange(Wo)[None, :]).astype(f32)

    kernel = _make_kernel(Cp, H, W)
    out_flat = pl.pallas_call(
        kernel,
        out_shape=jax.ShapeDtypeStruct((N, Cp, HWo), x.dtype),
        grid=(N,),
        in_specs=[
            pl.BlockSpec((None, Cp, HW), lambda n: (n, 0, 0)),
            _const_spec((2, Cp, Cp)),
            _const_spec((Cp, _NPARAM)),
            _const_spec((4, HW)),
            _const_spec((W, Wo)),
        ],
        out_specs=pl.BlockSpec((None, Cp, HWo), lambda n: (n, 0, 0)),
        compiler_params=pltpu.CompilerParams(
            dimension_semantics=("parallel",),
            vmem_limit_bytes=_vmem_limit_bytes(),
        ),
    )(x_flat, pw_p, cparams, masks, selw)

    return out_flat[:, :C].reshape(N, C, Ho, Wo)


def _reference(x, dwv, dwh, pw, bn_scale, bn_bias):
    """Pure-JAX reference matching the PyTorch forward (eval-mode BN)."""
    C = x.shape[1]

    def conv(v, w, pad, groups=1):
        return lax.conv_general_dilated(
            v, w, window_strides=(1, 1), padding=pad,
            dimension_numbers=("NCHW", "OIHW", "NCHW"),
            feature_group_count=groups)

    def bn(v, idx):
        return v * bn_scale[idx][None, :, None, None] + bn_bias[idx][None, :, None, None]

    def ddsc(v, blk):
        wv = dwv[blk].reshape(C, 1, 3, 1)
        wh = dwh[blk].reshape(C, 1, 1, 3)
        wp = pw[blk].reshape(C, C, 1, 1)
        y = conv(v, wv, [(1, 1), (0, 0)], groups=C)
        y = conv(y, wh, [(0, 0), (1, 1)], groups=C)
        y = bn(y, 2 * blk)
        y = conv(y, wp, [(0, 0), (0, 0)])
        y = bn(y, 2 * blk + 1)
        return jax.nn.gelu(y, approximate=False)

    def maxpool(v):
        return lax.reduce_window(v, -jnp.inf, lax.max,
                                 (1, 1, 2, 2), (1, 1, 2, 2), "VALID")

    y1 = ddsc(x, 0)
    y2 = ddsc(y1, 1)
    y = bn(y2 + x, 4)
    return bn(maxpool(x) + maxpool(y), 5)


if __name__ == "__main__":
    N, C, H, W = 2, 4, 16, 16
    key = jax.random.PRNGKey(0)
    k = jax.random.split(key, 6)

    x = jax.random.normal(k[0], (N, C, H, W), jnp.float32)

    # Deterministic synthetic parameters (shapes implied by the module __init__).
    dwv = 0.3 * jax.random.normal(k[1], (2, C, 3), jnp.float32)   # Conv2d (C,1,3,1)
    dwh = 0.3 * jax.random.normal(k[2], (2, C, 3), jnp.float32)   # Conv2d (C,1,1,3)
    pw = 0.3 * jax.random.normal(k[3], (2, C, C), jnp.float32)    # Conv2d (C,C,1,1)

    # 6 BatchNorm2d layers (eval mode), folded to scale/bias.
    gamma = 1.0 + 0.1 * jax.random.normal(k[4], (6, C), jnp.float32)
    beta = 0.05 * jax.random.normal(k[5], (6, C), jnp.float32)
    running_mean = jnp.zeros((6, C), jnp.float32)
    running_var = jnp.ones((6, C), jnp.float32)
    eps = 1e-5
    bn_scale = gamma / jnp.sqrt(running_var + eps)
    bn_bias = beta - running_mean * bn_scale

    out = residual_downsample_sep(x, dwv, dwh, pw, bn_scale, bn_bias)
    out = jax.block_until_ready(out)

    ref = _reference(x, dwv, dwh, pw, bn_scale, bn_bias)
    assert out.shape == (N, C, H // 2, W // 2)
    if not jnp.allclose(out, ref, atol=2e-4, rtol=2e-4):
        max_err = float(jnp.max(jnp.abs(out - ref)))
        raise AssertionError(f"kernel/reference mismatch, max abs err = {max_err}")

    print("KERNEL_OK")
</pallas_src>

<mosaic_0001>
module attributes {stable_mosaic.version = 11 : i64} {
  func.func @kernel(%arg0: i32, %arg1: memref<1x8x256xf32, #tpu.memory_space<vmem>>, %arg2: memref<2x8x8xf32, #tpu.memory_space<vmem>>, %arg3: memref<8x18xf32, #tpu.memory_space<vmem>>, %arg4: memref<4x256xf32, #tpu.memory_space<vmem>>, %arg5: memref<16x8xf32, #tpu.memory_space<vmem>>, %arg6: memref<1x8x64xf32, #tpu.memory_space<vmem>>) attributes {dimension_semantics = [#tpu.dimension_semantics<parallel>], iteration_bounds = array<i64: 2>, scalar_prefetch = 0 : i64, scratch_operands = 0 : i64, tpu.core_type = #tpu.core_type<tc>, window_params = [{transform_indices = @transform_0, window_bounds = array<i64: 1, 8, 256>}, {pipeline_mode = #tpu.pipeline_mode<synchronous>, transform_indices = @transform_1, window_bounds = array<i64: 2, 8, 8>}, {pipeline_mode = #tpu.pipeline_mode<synchronous>, transform_indices = @transform_2, window_bounds = array<i64: 8, 18>}, {pipeline_mode = #tpu.pipeline_mode<synchronous>, transform_indices = @transform_3, window_bounds = array<i64: 4, 256>}, {pipeline_mode = #tpu.pipeline_mode<synchronous>, transform_indices = @transform_4, window_bounds = array<i64: 16, 8>}, {transform_indices = @transform_5, window_bounds = array<i64: 1, 8, 64>}]} {
    %c0 = arith.constant 0 : index
    %c0_0 = arith.constant 0 : index
    %0 = vector.load %arg3[%c0, %c0_0] : memref<8x18xf32, #tpu.memory_space<vmem>>, vector<8x18xf32>
    %c0_1 = arith.constant 0 : index
    %c0_2 = arith.constant 0 : index
    %1 = vector.load %arg4[%c0_1, %c0_2] : memref<4x256xf32, #tpu.memory_space<vmem>>, vector<4x256xf32>
    %2 = vector.extract_strided_slice %1 {offsets = [0, 0], sizes = [1, 256], strides = [1, 1]} : vector<4x256xf32> to vector<1x256xf32>
    %3 = vector.extract_strided_slice %1 {offsets = [1, 0], sizes = [1, 256], strides = [1, 1]} : vector<4x256xf32> to vector<1x256xf32>
    %4 = vector.extract_strided_slice %1 {offsets = [2, 0], sizes = [1, 256], strides = [1, 1]} : vector<4x256xf32> to vector<1x256xf32>
    %5 = vector.extract_strided_slice %1 {offsets = [3, 0], sizes = [1, 256], strides = [1, 1]} : vector<4x256xf32> to vector<1x256xf32>
    %c0_3 = arith.constant 0 : index
    %c0_4 = arith.constant 0 : index
    %c0_5 = arith.constant 0 : index
    %6 = vector.load %arg1[%c0_3, %c0_4, %c0_5] : memref<1x8x256xf32, #tpu.memory_space<vmem>>, vector<1x8x256xf32>
    %7 = vector.shape_cast %6 : vector<1x8x256xf32> to vector<8x256xf32>
    %8 = vector.extract_strided_slice %0 {offsets = [0, 0], sizes = [8, 1], strides = [1, 1]} : vector<8x18xf32> to vector<8x1xf32>
    %c16_i32 = arith.constant 16 : i32
    %9 = tpu.dynamic_rotate %7 by %c16_i32 dim 1 : vector<8x256xf32>, i32 -> vector<8x256xf32>
    %10 = vector.broadcast %2 : vector<1x256xf32> to vector<8x256xf32>
    %11 = arith.mulf %9, %10 : vector<8x256xf32>
    %12 = vector.broadcast %8 : vector<8x1xf32> to vector<8x256xf32>
    %13 = arith.mulf %12, %11 : vector<8x256xf32>
    %14 = vector.extract_strided_slice %0 {offsets = [0, 1], sizes = [8, 1], strides = [1, 1]} : vector<8x18xf32> to vector<8x1xf32>
    %15 = vector.broadcast %14 : vector<8x1xf32> to vector<8x256xf32>
    %16 = arith.mulf %15, %7 : vector<8x256xf32>
    %17 = arith.addf %13, %16 : vector<8x256xf32>
    %18 = vector.extract_strided_slice %0 {offsets = [0, 2], sizes = [8, 1], strides = [1, 1]} : vector<8x18xf32> to vector<8x1xf32>
    %c240_i32 = arith.constant 240 : i32
    %19 = tpu.dynamic_rotate %7 by %c240_i32 dim 1 : vector<8x256xf32>, i32 -> vector<8x256xf32>
    %20 = vector.broadcast %3 : vector<1x256xf32> to vector<8x256xf32>
    %21 = arith.mulf %19, %20 : vector<8x256xf32>
    %22 = vector.broadcast %18 : vector<8x1xf32> to vector<8x256xf32>
    %23 = arith.mulf %22, %21 : vector<8x256xf32>
    %24 = arith.addf %17, %23 : vector<8x256xf32>
    %25 = vector.extract_strided_slice %0 {offsets = [0, 3], sizes = [8, 1], strides = [1, 1]} : vector<8x18xf32> to vector<8x1xf32>
    %c1_i32 = arith.constant 1 : i32
    %26 = tpu.dynamic_rotate %24 by %c1_i32 dim 1 : vector<8x256xf32>, i32 -> vector<8x256xf32>
    %27 = vector.broadcast %4 : vector<1x256xf32> to vector<8x256xf32>
    %28 = arith.mulf %26, %27 : vector<8x256xf32>
    %29 = vector.broadcast %25 : vector<8x1xf32> to vector<8x256xf32>
    %30 = arith.mulf %29, %28 : vector<8x256xf32>
    %31 = vector.extract_strided_slice %0 {offsets = [0, 4], sizes = [8, 1], strides = [1, 1]} : vector<8x18xf32> to vector<8x1xf32>
    %32 = vector.broadcast %31 : vector<8x1xf32> to vector<8x256xf32>
    %33 = arith.mulf %32, %24 : vector<8x256xf32>
    %34 = arith.addf %30, %33 : vector<8x256xf32>
    %35 = vector.extract_strided_slice %0 {offsets = [0, 5], sizes = [8, 1], strides = [1, 1]} : vector<8x18xf32> to vector<8x1xf32>
    %c255_i32 = arith.constant 255 : i32
    %36 = tpu.dynamic_rotate %24 by %c255_i32 dim 1 : vector<8x256xf32>, i32 -> vector<8x256xf32>
    %37 = vector.broadcast %5 : vector<1x256xf32> to vector<8x256xf32>
    %38 = arith.mulf %36, %37 : vector<8x256xf32>
    %39 = vector.broadcast %35 : vector<8x1xf32> to vector<8x256xf32>
    %40 = arith.mulf %39, %38 : vector<8x256xf32>
    %41 = arith.addf %34, %40 : vector<8x256xf32>
    %c0_6 = arith.constant 0 : index
    %c0_7 = arith.constant 0 : index
    %c0_8 = arith.constant 0 : index
    %42 = vector.load %arg2[%c0_6, %c0_7, %c0_8] : memref<2x8x8xf32, #tpu.memory_space<vmem>>, vector<1x8x8xf32>
    %43 = vector.shape_cast %42 : vector<1x8x8xf32> to vector<8x8xf32>
    %cst = arith.constant dense<0.000000e+00> : vector<8x256xf32>
    %44 = tpu.matmul %43, %41, %cst {dimension_numbers = #tpu.dot_dimension_numbers<[1], [0], [0], [1], [0, 0, 1, 1], [], []>} : vector<8x8xf32>, vector<8x256xf32>, vector<8x256xf32> -> vector<8x256xf32>
    %45 = vector.extract_strided_slice %0 {offsets = [0, 12], sizes = [8, 1], strides = [1, 1]} : vector<8x18xf32> to vector<8x1xf32>
    %46 = vector.broadcast %45 : vector<8x1xf32> to vector<8x256xf32>
    %47 = arith.addf %44, %46 : vector<8x256xf32>
    %cst_9 = arith.constant 5.000000e-01 : f32
    %48 = vector.broadcast %cst_9 : f32 to vector<8x256xf32>
    %49 = arith.mulf %48, %47 : vector<8x256xf32>
    %cst_10 = arith.constant 0.707106769 : f32
    %50 = vector.broadcast %cst_10 : f32 to vector<8x256xf32>
    %51 = arith.mulf %47, %50 : vector<8x256xf32>
    %52 = math.absf %51 : vector<8x256xf32>
    %cst_11 = arith.constant 0.327591091 : f32
    %53 = vector.broadcast %cst_11 : f32 to vector<8x256xf32>
    %54 = arith.mulf %53, %52 : vector<8x256xf32>
    %cst_12 = arith.constant 1.000000e+00 : f32
    %55 = vector.broadcast %cst_12 : f32 to vector<8x256xf32>
    %56 = arith.addf %55, %54 : vector<8x256xf32>
    %57 = tpu.reciprocal %56 : vector<8x256xf32> -> vector<8x256xf32>
    %cst_13 = arith.constant 1.06140542 : f32
    %58 = vector.broadcast %cst_13 : f32 to vector<8x256xf32>
    %59 = arith.mulf %58, %57 : vector<8x256xf32>
    %cst_14 = arith.constant -1.45315206 : f32
    %60 = vector.broadcast %cst_14 : f32 to vector<8x256xf32>
    %61 = arith.addf %59, %60 : vector<8x256xf32>
    %62 = arith.mulf %61, %57 : vector<8x256xf32>
    %cst_15 = arith.constant 1.42141378 : f32
    %63 = vector.broadcast %cst_15 : f32 to vector<8x256xf32>
    %64 = arith.addf %62, %63 : vector<8x256xf32>
    %65 = arith.mulf %64, %57 : vector<8x256xf32>
    %cst_16 = arith.constant -0.284496725 : f32
    %66 = vector.broadcast %cst_16 : f32 to vector<8x256xf32>
    %67 = arith.addf %65, %66 : vector<8x256xf32>
    %68 = arith.mulf %67, %57 : vector<8x256xf32>
    %cst_17 = arith.constant 0.254829586 : f32
    %69 = vector.broadcast %cst_17 : f32 to vector<8x256xf32>
    %70 = arith.addf %68, %69 : vector<8x256xf32>
    %71 = arith.mulf %70, %57 : vector<8x256xf32>
    %cst_18 = arith.constant 0.000000e+00 : f32
    %72 = vector.broadcast %cst_18 : f32 to vector<8x256xf32>
    %73 = arith.subf %72, %52 : vector<8x256xf32>
    %74 = arith.mulf %73, %52 : vector<8x256xf32>
    %75 = math.exp %74 : vector<8x256xf32>
    %76 = arith.mulf %71, %75 : vector<8x256xf32>
    %cst_19 = arith.constant 1.000000e+00 : f32
    %77 = vector.broadcast %cst_19 : f32 to vector<8x256xf32>
    %78 = arith.subf %77, %76 : vector<8x256xf32>
    %cst_20 = arith.constant 0.000000e+00 : f32
    %79 = vector.broadcast %cst_20 : f32 to vector<8x256xf32>
    %80 = arith.cmpf oge, %51, %79 : vector<8x256xf32>
    %cst_21 = arith.constant 0.000000e+00 : f32
    %81 = vector.broadcast %cst_21 : f32 to vector<8x256xf32>
    %82 = arith.subf %81, %78 : vector<8x256xf32>
    %83 = arith.select %80, %78, %82 : vector<8x256xi1>, vector<8x256xf32>
    %cst_22 = arith.constant 1.000000e+00 : f32
    %84 = vector.broadcast %cst_22 : f32 to vector<8x256xf32>
    %85 = arith.addf %84, %83 : vector<8x256xf32>
    %86 = arith.mulf %49, %85 : vector<8x256xf32>
    %87 = vector.extract_strided_slice %0 {offsets = [0, 6], sizes = [8, 1], strides = [1, 1]} : vector<8x18xf32> to vector<8x1xf32>
    %c16_i32_23 = arith.constant 16 : i32
    %88 = tpu.dynamic_rotate %86 by %c16_i32_23 dim 1 : vector<8x256xf32>, i32 -> vector<8x256xf32>
    %89 = vector.broadcast %2 : vector<1x256xf32> to vector<8x256xf32>
    %90 = arith.mulf %88, %89 : vector<8x256xf32>
    %91 = vector.broadcast %87 : vector<8x1xf32> to vector<8x256xf32>
    %92 = arith.mulf %91, %90 : vector<8x256xf32>
    %93 = vector.extract_strided_slice %0 {offsets = [0, 7], sizes = [8, 1], strides = [1, 1]} : vector<8x18xf32> to vector<8x1xf32>
    %94 = vector.broadcast %93 : vector<8x1xf32> to vector<8x256xf32>
    %95 = arith.mulf %94, %86 : vector<8x256xf32>
    %96 = arith.addf %92, %95 : vector<8x256xf32>
    %97 = vector.extract_strided_slice %0 {offsets = [0, 8], sizes = [8, 1], strides = [1, 1]} : vector<8x18xf32> to vector<8x1xf32>
    %c240_i32_24 = arith.constant 240 : i32
    %98 = tpu.dynamic_rotate %86 by %c240_i32_24 dim 1 : vector<8x256xf32>, i32 -> vector<8x256xf32>
    %99 = vector.broadcast %3 : vector<1x256xf32> to vector<8x256xf32>
    %100 = arith.mulf %98, %99 : vector<8x256xf32>
    %101 = vector.broadcast %97 : vector<8x1xf32> to vector<8x256xf32>
    %102 = arith.mulf %101, %100 : vector<8x256xf32>
    %103 = arith.addf %96, %102 : vector<8x256xf32>
    %104 = vector.extract_strided_slice %0 {offsets = [0, 9], sizes = [8, 1], strides = [1, 1]} : vector<8x18xf32> to vector<8x1xf32>
    %c1_i32_25 = arith.constant 1 : i32
    %105 = tpu.dynamic_rotate %103 by %c1_i32_25 dim 1 : vector<8x256xf32>, i32 -> vector<8x256xf32>
    %106 = vector.broadcast %4 : vector<1x256xf32> to vector<8x256xf32>
    %107 = arith.mulf %105, %106 : vector<8x256xf32>
    %108 = vector.broadcast %104 : vector<8x1xf32> to vector<8x256xf32>
    %109 = arith.mulf %108, %107 : vector<8x256xf32>
    %110 = vector.extract_strided_slice %0 {offsets = [0, 10], sizes = [8, 1], strides = [1, 1]} : vector<8x18xf32> to vector<8x1xf32>
    %111 = vector.broadcast %110 : vector<8x1xf32> to vector<8x256xf32>
    %112 = arith.mulf %111, %103 : vector<8x256xf32>
    %113 = arith.addf %109, %112 : vector<8x256xf32>
    %114 = vector.extract_strided_slice %0 {offsets = [0, 11], sizes = [8, 1], strides = [1, 1]} : vector<8x18xf32> to vector<8x1xf32>
    %c255_i32_26 = arith.constant 255 : i32
    %115 = tpu.dynamic_rotate %103 by %c255_i32_26 dim 1 : vector<8x256xf32>, i32 -> vector<8x256xf32>
    %116 = vector.broadcast %5 : vector<1x256xf32> to vector<8x256xf32>
    %117 = arith.mulf %115, %116 : vector<8x256xf32>
    %118 = vector.broadcast %114 : vector<8x1xf32> to vector<8x256xf32>
    %119 = arith.mulf %118, %117 : vector<8x256xf32>
    %120 = arith.addf %113, %119 : vector<8x256xf32>
    %c1 = arith.constant 1 : index
    %c0_27 = arith.constant 0 : index
    %c0_28 = arith.constant 0 : index
    %121 = vector.load %arg2[%c1, %c0_27, %c0_28] : memref<2x8x8xf32, #tpu.memory_space<vmem>>, vector<1x8x8xf32>
    %122 = vector.shape_cast %121 : vector<1x8x8xf32> to vector<8x8xf32>
    %cst_29 = arith.constant dense<0.000000e+00> : vector<8x256xf32>
    %123 = tpu.matmul %122, %120, %cst_29 {dimension_numbers = #tpu.dot_dimension_numbers<[1], [0], [0], [1], [0, 0, 1, 1], [], []>} : vector<8x8xf32>, vector<8x256xf32>, vector<8x256xf32> -> vector<8x256xf32>
    %124 = vector.extract_strided_slice %0 {offsets = [0, 13], sizes = [8, 1], strides = [1, 1]} : vector<8x18xf32> to vector<8x1xf32>
    %125 = vector.broadcast %124 : vector<8x1xf32> to vector<8x256xf32>
    %126 = arith.addf %123, %125 : vector<8x256xf32>
    %cst_30 = arith.constant 5.000000e-01 : f32
    %127 = vector.broadcast %cst_30 : f32 to vector<8x256xf32>
    %128 = arith.mulf %127, %126 : vector<8x256xf32>
    %cst_31 = arith.constant 0.707106769 : f32
    %129 = vector.broadcast %cst_31 : f32 to vector<8x256xf32>
    %130 = arith.mulf %126, %129 : vector<8x256xf32>
    %131 = math.absf %130 : vector<8x256xf32>
    %cst_32 = arith.constant 0.327591091 : f32
    %132 = vector.broadcast %cst_32 : f32 to vector<8x256xf32>
    %133 = arith.mulf %132, %131 : vector<8x256xf32>
    %cst_33 = arith.constant 1.000000e+00 : f32
    %134 = vector.broadcast %cst_33 : f32 to vector<8x256xf32>
    %135 = arith.addf %134, %133 : vector<8x256xf32>
    %136 = tpu.reciprocal %135 : vector<8x256xf32> -> vector<8x256xf32>
    %cst_34 = arith.constant 1.06140542 : f32
    %137 = vector.broadcast %cst_34 : f32 to vector<8x256xf32>
    %138 = arith.mulf %137, %136 : vector<8x256xf32>
    %cst_35 = arith.constant -1.45315206 : f32
    %139 = vector.broadcast %cst_35 : f32 to vector<8x256xf32>
    %140 = arith.addf %138, %139 : vector<8x256xf32>
    %141 = arith.mulf %140, %136 : vector<8x256xf32>
    %cst_36 = arith.constant 1.42141378 : f32
    %142 = vector.broadcast %cst_36 : f32 to vector<8x256xf32>
    %143 = arith.addf %141, %142 : vector<8x256xf32>
    %144 = arith.mulf %143, %136 : vector<8x256xf32>
    %cst_37 = arith.constant -0.284496725 : f32
    %145 = vector.broadcast %cst_37 : f32 to vector<8x256xf32>
    %146 = arith.addf %144, %145 : vector<8x256xf32>
    %147 = arith.mulf %146, %136 : vector<8x256xf32>
    %cst_38 = arith.constant 0.254829586 : f32
    %148 = vector.broadcast %cst_38 : f32 to vector<8x256xf32>
    %149 = arith.addf %147, %148 : vector<8x256xf32>
    %150 = arith.mulf %149, %136 : vector<8x256xf32>
    %cst_39 = arith.constant 0.000000e+00 : f32
    %151 = vector.broadcast %cst_39 : f32 to vector<8x256xf32>
    %152 = arith.subf %151, %131 : vector<8x256xf32>
    %153 = arith.mulf %152, %131 : vector<8x256xf32>
    %154 = math.exp %153 : vector<8x256xf32>
    %155 = arith.mulf %150, %154 : vector<8x256xf32>
    %cst_40 = arith.constant 1.000000e+00 : f32
    %156 = vector.broadcast %cst_40 : f32 to vector<8x256xf32>
    %157 = arith.subf %156, %155 : vector<8x256xf32>
    %cst_41 = arith.constant 0.000000e+00 : f32
    %158 = vector.broadcast %cst_41 : f32 to vector<8x256xf32>
    %159 = arith.cmpf oge, %130, %158 : vector<8x256xf32>
    %cst_42 = arith.constant 0.000000e+00 : f32
    %160 = vector.broadcast %cst_42 : f32 to vector<8x256xf32>
    %161 = arith.subf %160, %157 : vector<8x256xf32>
    %162 = arith.select %159, %157, %161 : vector<8x256xi1>, vector<8x256xf32>
    %cst_43 = arith.constant 1.000000e+00 : f32
    %163 = vector.broadcast %cst_43 : f32 to vector<8x256xf32>
    %164 = arith.addf %163, %162 : vector<8x256xf32>
    %165 = arith.mulf %128, %164 : vector<8x256xf32>
    %166 = vector.extract_strided_slice %0 {offsets = [0, 14], sizes = [8, 1], strides = [1, 1]} : vector<8x18xf32> to vector<8x1xf32>
    %167 = arith.addf %165, %7 : vector<8x256xf32>
    %168 = vector.broadcast %166 : vector<8x1xf32> to vector<8x256xf32>
    %169 = arith.mulf %168, %167 : vector<8x256xf32>
    %170 = vector.extract_strided_slice %0 {offsets = [0, 15], sizes = [8, 1], strides = [1, 1]} : vector<8x18xf32> to vector<8x1xf32>
    %171 = vector.broadcast %170 : vector<8x1xf32> to vector<8x256xf32>
    %172 = arith.addf %169, %171 : vector<8x256xf32>
    %c255_i32_44 = arith.constant 255 : i32
    %173 = tpu.dynamic_rotate %7 by %c255_i32_44 dim 1 : vector<8x256xf32>, i32 -> vector<8x256xf32>
    %174 = arith.maximumf %7, %173 : vector<8x256xf32>
    %c240_i32_45 = arith.constant 240 : i32
    %175 = tpu.dynamic_rotate %174 by %c240_i32_45 dim 1 : vector<8x256xf32>, i32 -> vector<8x256xf32>
    %176 = arith.maximumf %174, %175 : vector<8x256xf32>
    %c255_i32_46 = arith.constant 255 : i32
    %177 = tpu.dynamic_rotate %172 by %c255_i32_46 dim 1 : vector<8x256xf32>, i32 -> vector<8x256xf32>
    %178 = arith.maximumf %172, %177 : vector<8x256xf32>
    %c240_i32_47 = arith.constant 240 : i32
    %179 = tpu.dynamic_rotate %178 by %c240_i32_47 dim 1 : vector<8x256xf32>, i32 -> vector<8x256xf32>
    %180 = arith.maximumf %178, %179 : vector<8x256xf32>
    %181 = arith.addf %176, %180 : vector<8x256xf32>
    %c0_48 = arith.constant 0 : index
    %c0_49 = arith.constant 0 : index
    %182 = vector.load %arg5[%c0_48, %c0_49] : memref<16x8xf32, #tpu.memory_space<vmem>>, vector<16x8xf32>
    %183 = vector.extract_strided_slice %181 {offsets = [0, 0], sizes = [8, 16], strides = [1, 1]} : vector<8x256xf32> to vector<8x16xf32>
    %cst_50 = arith.constant dense<0.000000e+00> : vector<8x8xf32>
    %184 = tpu.matmul %183, %182, %cst_50 {dimension_numbers = #tpu.dot_dimension_numbers<[1], [0], [0], [1], [0, 0, 1, 1], [], []>} : vector<8x16xf32>, vector<16x8xf32>, vector<8x8xf32> -> vector<8x8xf32>
    %185 = vector.extract_strided_slice %181 {offsets = [0, 32], sizes = [8, 16], strides = [1, 1]} : vector<8x256xf32> to vector<8x16xf32>
    %cst_51 = arith.constant dense<0.000000e+00> : vector<8x8xf32>
    %186 = tpu.matmul %185, %182, %cst_51 {dimension_numbers = #tpu.dot_dimension_numbers<[1], [0], [0], [1], [0, 0, 1, 1], [], []>} : vector<8x16xf32>, vector<16x8xf32>, vector<8x8xf32> -> vector<8x8xf32>
    %187 = vector.extract_strided_slice %181 {offsets = [0, 64], sizes = [8, 16], strides = [1, 1]} : vector<8x256xf32> to vector<8x16xf32>
    %cst_52 = arith.constant dense<0.000000e+00> : vector<8x8xf32>
    %188 = tpu.matmul %187, %182, %cst_52 {dimension_numbers = #tpu.dot_dimension_numbers<[1], [0], [0], [1], [0, 0, 1, 1], [], []>} : vector<8x16xf32>, vector<16x8xf32>, vector<8x8xf32> -> vector<8x8xf32>
    %189 = vector.extract_strided_slice %181 {offsets = [0, 96], sizes = [8, 16], strides = [1, 1]} : vector<8x256xf32> to vector<8x16xf32>
    %cst_53 = arith.constant dense<0.000000e+00> : vector<8x8xf32>
    %190 = tpu.matmul %189, %182, %cst_53 {dimension_numbers = #tpu.dot_dimension_numbers<[1], [0], [0], [1], [0, 0, 1, 1], [], []>} : vector<8x16xf32>, vector<16x8xf32>, vector<8x8xf32> -> vector<8x8xf32>
    %191 = vector.extract_strided_slice %181 {offsets = [0, 128], sizes = [8, 16], strides = [1, 1]} : vector<8x256xf32> to vector<8x16xf32>
    %cst_54 = arith.constant dense<0.000000e+00> : vector<8x8xf32>
    %192 = tpu.matmul %191, %182, %cst_54 {dimension_numbers = #tpu.dot_dimension_numbers<[1], [0], [0], [1], [0, 0, 1, 1], [], []>} : vector<8x16xf32>, vector<16x8xf32>, vector<8x8xf32> -> vector<8x8xf32>
    %193 = vector.extract_strided_slice %181 {offsets = [0, 160], sizes = [8, 16], strides = [1, 1]} : vector<8x256xf32> to vector<8x16xf32>
    %cst_55 = arith.constant dense<0.000000e+00> : vector<8x8xf32>
    %194 = tpu.matmul %193, %182, %cst_55 {dimension_numbers = #tpu.dot_dimension_numbers<[1], [0], [0], [1], [0, 0, 1, 1], [], []>} : vector<8x16xf32>, vector<16x8xf32>, vector<8x8xf32> -> vector<8x8xf32>
    %195 = vector.extract_strided_slice %181 {offsets = [0, 192], sizes = [8, 16], strides = [1, 1]} : vector<8x256xf32> to vector<8x16xf32>
    %cst_56 = arith.constant dense<0.000000e+00> : vector<8x8xf32>
    %196 = tpu.matmul %195, %182, %cst_56 {dimension_numbers = #tpu.dot_dimension_numbers<[1], [0], [0], [1], [0, 0, 1, 1], [], []>} : vector<8x16xf32>, vector<16x8xf32>, vector<8x8xf32> -> vector<8x8xf32>
    %197 = vector.extract_strided_slice %181 {offsets = [0, 224], sizes = [8, 16], strides = [1, 1]} : vector<8x256xf32> to vector<8x16xf32>
    %cst_57 = arith.constant dense<0.000000e+00> : vector<8x8xf32>
    %198 = tpu.matmul %197, %182, %cst_57 {dimension_numbers = #tpu.dot_dimension_numbers<[1], [0], [0], [1], [0, 0, 1, 1], [], []>} : vector<8x16xf32>, vector<16x8xf32>, vector<8x8xf32> -> vector<8x8xf32>
    %199 = tpu.concatenate %184, %186, %188, %190, %192, %194, %196, %198 in 1 : vector<8x8xf32>, vector<8x8xf32>, vector<8x8xf32>, vector<8x8xf32>, vector<8x8xf32>, vector<8x8xf32>, vector<8x8xf32>, vector<8x8xf32> -> vector<8x64xf32>
    %200 = vector.extract_strided_slice %0 {offsets = [0, 16], sizes = [8, 1], strides = [1, 1]} : vector<8x18xf32> to vector<8x1xf32>
    %201 = vector.broadcast %200 : vector<8x1xf32> to vector<8x64xf32>
    %202 = arith.mulf %201, %199 : vector<8x64xf32>
    %203 = vector.extract_strided_slice %0 {offsets = [0, 17], sizes = [8, 1], strides = [1, 1]} : vector<8x18xf32> to vector<8x1xf32>
    %204 = vector.broadcast %203 : vector<8x1xf32> to vector<8x64xf32>
    %205 = arith.addf %202, %204 : vector<8x64xf32>
    %c0_58 = arith.constant 0 : index
    %c0_59 = arith.constant 0 : index
    %c0_60 = arith.constant 0 : index
    %206 = vector.load %arg6[%c0_58, %c0_59, %c0_60] : memref<1x8x64xf32, #tpu.memory_space<vmem>>, vector<1x8x64xf32>
    %207 = vector.shape_cast %206 : vector<1x8x64xf32> to vector<8x64xf32>
    %208 = vector.shape_cast %205 : vector<8x64xf32> to vector<1x8x64xf32>
    tpu.vector_store %arg6[%c0_58, %c0_59, %c0_60], %208 {strides = array<i32>} : memref<1x8x64xf32, #tpu.memory_space<vmem>>, vector<1x8x64xf32>,
    return
  }
  func.func @transform_0(%arg0: i32) -> (i32, i32, i32) {
    %c0_i32 = arith.constant 0 : i32
    %c0_i32_0 = arith.constant 0 : i32
    %c0_i32_1 = arith.constant 0 : i32
    return %arg0, %c0_i32, %c0_i32_0 : i32, i32, i32
  }
  func.func @transform_1(%arg0: i32) -> (i32, i32, i32) {
    %c0_i32 = arith.constant 0 : i32
    %c0_i32_0 = arith.constant 0 : i32
    %c0_i32_1 = arith.constant 0 : i32
    %c0_i32_2 = arith.constant 0 : i32
    return %c0_i32, %c0_i32_0, %c0_i32_1 : i32, i32, i32
  }
  func.func @transform_2(%arg0: i32) -> (i32, i32) {
    %c0_i32 = arith.constant 0 : i32
    %c0_i32_0 = arith.constant 0 : i32
    %c0_i32_1 = arith.constant 0 : i32
    return %c0_i32, %c0_i32_0 : i32, i32
  }
  func.func @transform_3(%arg0: i32) -> (i32, i32) {
    %c0_i32 = arith.constant 0 : i32
    %c0_i32_0 = arith.constant 0 : i32
    %c0_i32_1 = arith.constant 0 : i32
    return %c0_i32, %c0_i32_0 : i32, i32
  }
  func.func @transform_4(%arg0: i32) -> (i32, i32) {
    %c0_i32 = arith.constant 0 : i32
    %c0_i32_0 = arith.constant 0 : i32
    %c0_i32_1 = arith.constant 0 : i32
    return %c0_i32, %c0_i32_0 : i32, i32
  }
  func.func @transform_5(%arg0: i32) -> (i32, i32, i32) {
    %c0_i32 = arith.constant 0 : i32
    %c0_i32_0 = arith.constant 0 : i32
    %c0_i32_1 = arith.constant 0 : i32
    return %arg0, %c0_i32, %c0_i32_0 : i32, i32, i32
  }
}

</mosaic_0001>

<llo_original>
// kernel: residual_downsample_sep.1
$region0: #{residual_downsample_sep.1}
  #allocation0 [shape = 'u32[]', space=smem, size = 0x4, offset = 0x4, fixed_abs, tag = 'smem constant byte address 0x4 - core index']
  #allocation1 [shape = 'u32[144,128]{1,0:T(1,128)}', space=vmem, size = 0x12000, scoped, tag = 'internal scratch']
  %s0 = inlined_call_operand.vmem [shape: f32[2,8,256], index: 0, kind: input, shape index: {}]
  %s1 = inlined_call_operand.vmem [shape: f32[2,8,8], index: 1, kind: input, shape index: {}]
  %s2 = inlined_call_operand.vmem [shape: f32[8,18], index: 2, kind: input, shape index: {}]
  %s3 = inlined_call_operand.vmem [shape: f32[4,256], index: 3, kind: input, shape index: {}]
  %s4 = inlined_call_operand.vmem [shape: f32[16,8], index: 4, kind: input, shape index: {}]
  %s5 = inlined_call_operand.vmem [shape: f32[2,8,64], index: 5, kind: output, shape index: {}]
  %s6 = sld [smem:[#allocation0]]
  $region53: #{residual_downsample_sep.1} parent=0
    _
  %s8 = ssub.s32 1, %s6
  %s9 = scalar_select 0, %s8, %s6
  loop: start=0, step=1, limit=4
  $region2: #{residual_downsample_sep.1} parent=0 // loop_pre_header
    _
  $region3: #{residual_downsample_sep.1} parent=0 // loop_header
    %s11 = sphi 0, %s15
    %p12 = scmp.ge.s32.totalorder %s11, 4
    %s21 = sphi 0, %s23
    %s24 = sphi 0, %s21
    %s25 = sphi 0, %s24
    %s41 = sphi 0, %s25
    %s45 = sphi 0, %s45
    %s47 = sphi 0, %s45
    %s48 = sphi 0, %s47
    %s62 = sphi 0, %s48
    %s66 = sphi 0, %s66
    %s68 = sphi 0, %s66
    %s69 = sphi 0, %s68
    %s83 = sphi 0, %s69
    %s87 = sphi 0, %s87
    %s89 = sphi 0, %s87
    %s90 = sphi 0, %s89
    %s104 = sphi 0, %s90
    %s108 = sphi 0, %s108
    %s110 = sphi 0, %s108
    %s111 = sphi 0, %s110
    %s125 = sphi 0, %s111
    %s131 = sphi 0, %s133
    %s134 = sphi 0, %s131
    %s135 = sphi 0, %s134
    %s151 = sphi 0, %s135
  $region4: #{residual_downsample_sep.1} parent=0 // loop_header_branch
    %14 = sbr.rel (%p12) target = $region8
  $region5: #{residual_downsample_sep.1} parent=0 // loop_body
    %s16 = ssub.s32 %s11, 1
    %s17 = ssub.s32 %s11, 2
    %s18 = sadd.s32 %s11, 1
    %s19 = ssub.s32 %s11, %s18
    %p20 = scmp.eq.s32.totalorder %s19, 0
    %s22 = sadd.s32 %s21, 1
    %s23 = scalar_select %p20, %s21, %s22
    %p26 = pneg %p20
    %p27 = scmp.eq.s32.totalorder %s11, 1
    %p28 = por %p26, %p27
    %p29 = scmp.ne.s32.totalorder %s21, %s24
    %p30 = scmp.eq.s32.totalorder %s11, 0
    %p31 = por %p29, %p30
    %p32 = scmp.ne.s32.totalorder %s21, %s24
    %p33 = scmp.eq.s32.totalorder %s16, 1
    %p34 = por %p32, %p33
    %p35 = scmp.ne.s32.totalorder %s24, %s25
    %p36 = scmp.eq.s32.totalorder %s16, 0
    %p37 = por %p35, %p36
    %p38 = scmp.ne.s32.totalorder %s24, %s25
    %p39 = scmp.eq.s32.totalorder %s17, 1
    %p40 = por %p38, %p39
    %p42 = scmp.ne.s32.totalorder %s25, %s41
    %p43 = scmp.eq.s32.totalorder %s17, 0
    %p44 = por %p42, %p43
    %s46 = sadd.s32 %s45, 1
    %p49 = scmp.eq.s32.totalorder %s11, 1
    %p50 = scmp.ne.s32.totalorder %s45, %s47
    %p51 = scmp.eq.s32.totalorder %s11, 0
    %p52 = por %p50, %p51
    %p53 = scmp.ne.s32.totalorder %s45, %s47
    %p54 = scmp.eq.s32.totalorder %s16, 1
    %p55 = por %p53, %p54
    %p56 = scmp.ne.s32.totalorder %s47, %s48
    %p57 = scmp.eq.s32.totalorder %s16, 0
    %p58 = por %p56, %p57
    %p59 = scmp.ne.s32.totalorder %s47, %s48
    %p60 = scmp.eq.s32.totalorder %s17, 1
    %p61 = por %p59, %p60
    %p63 = scmp.ne.s32.totalorder %s48, %s62
    %p64 = scmp.eq.s32.totalorder %s17, 0
    %p65 = por %p63, %p64
    %s67 = sadd.s32 %s66, 1
    %p70 = scmp.eq.s32.totalorder %s11, 1
    %p71 = scmp.ne.s32.totalorder %s66, %s68
    %p72 = scmp.eq.s32.totalorder %s11, 0
    %p73 = por %p71, %p72
    %p74 = scmp.ne.s32.totalorder %s66, %s68
    %p75 = scmp.eq.s32.totalorder %s16, 1
    %p76 = por %p74, %p75
    %p77 = scmp.ne.s32.totalorder %s68, %s69
    %p78 = scmp.eq.s32.totalorder %s16, 0
    %p79 = por %p77, %p78
    %p80 = scmp.ne.s32.totalorder %s68, %s69
    %p81 = scmp.eq.s32.totalorder %s17, 1
    %p82 = por %p80, %p81
    %p84 = scmp.ne.s32.totalorder %s69, %s83
    %p85 = scmp.eq.s32.totalorder %s17, 0
    %p86 = por %p84, %p85
    %s88 = sadd.s32 %s87, 1
    %p91 = scmp.eq.s32.totalorder %s11, 1
    %p92 = scmp.ne.s32.totalorder %s87, %s89
    %p93 = scmp.eq.s32.totalorder %s11, 0
    %p94 = por %p92, %p93
    %p95 = scmp.ne.s32.totalorder %s87, %s89
    %p96 = scmp.eq.s32.totalorder %s16, 1
    %p97 = por %p95, %p96
    %p98 = scmp.ne.s32.totalorder %s89, %s90
    %p99 = scmp.eq.s32.totalorder %s16, 0
    %p100 = por %p98, %p99
    %p101 = scmp.ne.s32.totalorder %s89, %s90
    %p102 = scmp.eq.s32.totalorder %s17, 1
    %p103 = por %p101, %p102
    %p105 = scmp.ne.s32.totalorder %s90, %s104
    %p106 = scmp.eq.s32.totalorder %s17, 0
    %p107 = por %p105, %p106
    %s109 = sadd.s32 %s108, 1
    %p112 = scmp.eq.s32.totalorder %s11, 1
    %p113 = scmp.ne.s32.totalorder %s108, %s110
    %p114 = scmp.eq.s32.totalorder %s11, 0
    %p115 = por %p113, %p114
    %p116 = scmp.ne.s32.totalorder %s108, %s110
    %p117 = scmp.eq.s32.totalorder %s16, 1
    %p118 = por %p116, %p117
    %p119 = scmp.ne.s32.totalorder %s110, %s111
    %p120 = scmp.eq.s32.totalorder %s16, 0
    %p121 = por %p119, %p120
    %p122 = scmp.ne.s32.totalorder %s110, %s111
    %p123 = scmp.eq.s32.totalorder %s17, 1
    %p124 = por %p122, %p123
    %p126 = scmp.ne.s32.totalorder %s111, %s125
    %p127 = scmp.eq.s32.totalorder %s17, 0
    %p128 = por %p126, %p127
    %s129 = ssub.s32 %s11, %s18
    %p130 = scmp.eq.s32.totalorder %s129, 0
    %s132 = sadd.s32 %s131, 1
    %s133 = scalar_select %p130, %s131, %s132
    %p136 = pneg %p130
    %p137 = scmp.eq.s32.totalorder %s11, 1
    %p138 = por %p136, %p137
    %p139 = scmp.ne.s32.totalorder %s131, %s134
    %p140 = scmp.eq.s32.totalorder %s11, 0
    %p141 = por %p139, %p140
    %p142 = scmp.ne.s32.totalorder %s131, %s134
    %p143 = scmp.eq.s32.totalorder %s16, 1
    %p144 = por %p142, %p143
    %p145 = scmp.ne.s32.totalorder %s134, %s135
    %p146 = scmp.eq.s32.totalorder %s16, 0
    %p147 = por %p145, %p146
    %p148 = scmp.ne.s32.totalorder %s134, %s135
    %p149 = scmp.eq.s32.totalorder %s17, 1
    %p150 = por %p148, %p149
    %p152 = scmp.ne.s32.totalorder %s135, %s151
    %p153 = scmp.eq.s32.totalorder %s17, 0
    %p154 = por %p152, %p153
    %p155 = scmp.le.s32.totalorder 1, %s11
    %p156 = scmp.lt.s32.totalorder %s11, 3
    %p157 = pnand %p155, %p156
    %p158 = pneg %p157
    // Predicated region
    $region9: #{residual_downsample_sep.1} parent=5 // pred_check
      _
    $region10: #{residual_downsample_sep.1} parent=5 // pred_check_branch
      %160 = sbr.rel (%p157) target = $region12
    $region11: #{residual_downsample_sep.1} parent=5 // pred_region
      %s161 = ssub.s32 %s11, 1
      // Predicated region
      $region13: #{residual_downsample_sep.1} parent=11 // pred_check
        %p162 = pneg %p58
      $region14: #{residual_downsample_sep.1} parent=11 // pred_check_branch
        %164 = sbr.rel (%p162) target = $region16
      $region15: #{residual_downsample_sep.1} parent=11 // pred_region
        _
      $region16: #{residual_downsample_sep.1} parent=11 // pred_fallthru
        _
      // Predicated region
      $region17: #{residual_downsample_sep.1} parent=11 // pred_check
        %p165 = pneg %p79
      $region18: #{residual_downsample_sep.1} parent=11 // pred_check_branch
        %167 = sbr.rel (%p165) target = $region20
      $region19: #{residual_downsample_sep.1} parent=11 // pred_region
        _
      $region20: #{residual_downsample_sep.1} parent=11 // pred_fallthru
        _
      // Predicated region
      $region21: #{residual_downsample_sep.1} parent=11 // pred_check
        %p168 = pneg %p100
      $region22: #{residual_downsample_sep.1} parent=11 // pred_check_branch
        %170 = sbr.rel (%p168) target = $region24
      $region23: #{residual_downsample_sep.1} parent=11 // pred_region
        _
      $region24: #{residual_downsample_sep.1} parent=11 // pred_fallthru
        _
      // Predicated region
      $region25: #{residual_downsample_sep.1} parent=11 // pred_check
        %p171 = pneg %p121
      $region26: #{residual_downsample_sep.1} parent=11 // pred_check_branch
        %173 = sbr.rel (%p171) target = $region28
      $region27: #{residual_downsample_sep.1} parent=11 // pred_region
        _
      $region28: #{residual_downsample_sep.1} parent=11 // pred_fallthru
        _
    $region12: #{residual_downsample_sep.1} parent=5 // pred_fallthru
      _
    %p174 = scmp.lt.s32.totalorder %s11, 2
    // Predicated region
    $region29: #{residual_downsample_sep.1} parent=5 // pred_check
      %p175 = pneg %p174
    $region30: #{residual_downsample_sep.1} parent=5 // pred_check_branch
      %177 = sbr.rel (%p175) target = $region32
    $region31: #{residual_downsample_sep.1} parent=5 // pred_region
      // Predicated region
      $region33: #{residual_downsample_sep.1} parent=31 // pred_check
        %p178 = pneg %p31
      $region34: #{residual_downsample_sep.1} parent=31 // pred_check_branch
        %180 = sbr.rel (%p178) target = $region36
      $region35: #{residual_downsample_sep.1} parent=31 // pred_region
        %p181 = scmp.lt.s32.totalorder %s11, 1
        %s182 = scalar_select %p181, %s11, 1
        %s183 = smul.addr %s182, 2
        %s184 = smul.addr %s183, 8
        %s185 = scalar_lea.vmem %s0, %s184
      $region36: #{residual_downsample_sep.1} parent=31 // pred_fallthru
        _
    $region32: #{residual_downsample_sep.1} parent=5 // pred_fallthru
      _
    %p186 = scmp.le.s32.totalorder 1, %s11
    %p187 = scmp.lt.s32.totalorder %s11, 3
    %p188 = pnand %p186, %p187
    %p189 = pneg %p188
    // Predicated region
    $region37: #{residual_downsample_sep.1} parent=5 // pred_check
      _
    $region38: #{residual_downsample_sep.1} parent=5 // pred_check_branch
      %191 = sbr.rel (%p188) target = $region40
    $region39: #{residual_downsample_sep.1} parent=5 // pred_region
      %s192 = ssub.s32 %s11, 1
      %p193 = scmp.lt.s32.totalorder %s16, 1
      %s194 = scalar_select %p193, %s16, 1
      %s195 = smul.addr %s194, 2
      %s196 = smul.addr %s195, 8
      %s197 = scalar_lea.vmem %s0, %s196
      %p198 = pneg %p37
      %p199 = pneg %p34
      %p200 = pneg %p58
      %p201 = pneg %p55
      %p202 = pneg %p79
      %p203 = pneg %p76
      %p204 = pneg %p100
      %p205 = pneg %p97
      %p206 = pneg %p121
      %p207 = pneg %p118
      %p208 = pneg %p147
      %p209 = pneg %p144
      %p210 = scmp.lt.s32.totalorder %s16, 1
      %s211 = scalar_select %p210, %s16, 1
      %s212 = smul.addr %s211, 8
      %s213 = scalar_lea.vmem %s5, %s212
      %p214 = scmp.lt.s32.totalorder %s16, 1
      %s215 = scalar_select %p214, %s16, 1
      %s216 = smul.addr %s215, 2
      %s217 = smul.addr %s216, 8
      %s218 = scalar_lea.vmem %s0, %s217
      %p219 = scmp.lt.s32.totalorder %s16, 1
      %s220 = scalar_select %p219, %s16, 1
      %s221 = smul.addr %s220, 8
      %s222 = scalar_lea.vmem %s5, %s221
      %v223 = vld [vmem:[%s2] sm:$0xff]
      %v224 = vld [vmem:[%s3] sm:$0xff]
      %v225 = vld [vmem:[%s218] sm:$0xff]
      %v226 = vld [vmem:[%s218 + $0x8] sm:$0xff]
      %227 = vrot.lane.b32.xlu0 %v225, 16
      %v228 = vpop.permute.xlu0 %227
      %229 = vrot.lane.b32.xlu0 %v226, 16
      %v230 = vpop.permute.xlu0 %229
      %v231 = vlaneseq
      %v232 = vand.u32 %v231, 127
      %vm233 = vcmp.lt.s32.totalorder %v232, 16
      %v234 = vsel %vm233, %v228, %v230
      %v235 = vsel %vm233, %v230, %v228
      %v237 = vlaneseq
      %v238 = vshrl.u32 %v237, 7
      %v239 = vsub.s32 0, %v238
      %v240 = vrot.slane %v224, %v239
      %v241 = vlaneseq
      %v242 = vshrl.u32 %v241, 7
      %v243 = vsub.s32 4, %v242
      %v244 = vrot.slane %v224, %v243
      %v247 = vlaneseq
      %v248 = vshrl.u32 %v247, 7
      %v249 = vsub.s32 0, %v248
      %v250 = vrot.slane %v240, %v249
      %v251 = vlaneseq
      %v252 = vshrl.u32 %v251, 7
      %v253 = vsub.s32 0, %v252
      %v254 = vrot.slane %v244, %v253
      %v255 = vmul.f32 %v235, %v250
      %v256 = vmul.f32 %v234, %v254
      %258 = vset.pattern.permute.xlu0 0
      %259 = vperm.xlu0 %258, %v223
      %v260 = vpop.permute.xlu0 %259
      %v262 = vmul.f32 %v260, %v255
      %v263 = vmul.f32 %v260, %v256
      %264 = vset.pattern.permute.xlu0 1
      %265 = vperm.xlu0 %264, %v223
      %v266 = vpop.permute.xlu0 %265
      %v268 = vmul.f32 %v266, %v225
      %v269 = vmul.f32 %v266, %v226
      %v270 = vadd.f32 %v262, %v268
      %v271 = vadd.f32 %v263, %v269
      %272 = vrot.lane.b32.xlu0 %v225, 112
      %v273 = vpop.permute.xlu0 %272
      %274 = vrot.lane.b32.xlu0 %v226, 112
      %v275 = vpop.permute.xlu0 %274
      %vm276 = vcmp.lt.s32.totalorder %v232, 112
      %v277 = vsel %vm276, %v273, %v275
      %v278 = vsel %vm276, %v275, %v273
      %v279 = vlaneseq
      %v280 = vshrl.u32 %v279, 7
      %v281 = vsub.s32 1, %v280
      %v282 = vrot.slane %v224, %v281
      %v283 = vlaneseq
      %v284 = vshrl.u32 %v283, 7
      %v285 = vsub.s32 5, %v284
      %v286 = vrot.slane %v224, %v285
      %v289 = vlaneseq
      %v290 = vshrl.u32 %v289, 7
      %v291 = vsub.s32 1, %v290
      %v292 = vrot.slane %v282, %v291
      %v293 = vlaneseq
      %v294 = vshrl.u32 %v293, 7
      %v295 = vsub.s32 1, %v294
      %v296 = vrot.slane %v286, %v295
      %v297 = vmul.f32 %v277, %v292
      %v298 = vmul.f32 %v278, %v296
      %299 = vset.pattern.permute.xlu0 2
      %300 = vperm.xlu0 %299, %v223
      %v301 = vpop.permute.xlu0 %300
      %v303 = vmul.f32 %v301, %v297
      %v304 = vmul.f32 %v301, %v298
      %v305 = vadd.f32 %v270, %v303
      %v306 = vadd.f32 %v271, %v304
      %307 = vrot.lane.b32.xlu0 %v305, 1
      %v308 = vpop.permute.xlu0 %307
      %309 = vrot.lane.b32.xlu0 %v306, 1
      %v310 = vpop.permute.xlu0 %309
      %vm311 = vcmp.lt.s32.totalorder %v232, 1
      %v312 = vsel %vm311, %v308, %v310
      %v313 = vsel %vm311, %v310, %v308
      %v314 = vlaneseq
      %v315 = vshrl.u32 %v314, 7
      %v316 = vsub.s32 2, %v315
      %v317 = vrot.slane %v224, %v316
      %v318 = vlaneseq
      %v319 = vshrl.u32 %v318, 7
      %v320 = vsub.s32 6, %v319
      %v321 = vrot.slane %v224, %v320
      %v324 = vlaneseq
      %v325 = vshrl.u32 %v324, 7
      %v326 = vsub.s32 2, %v325
      %v327 = vrot.slane %v317, %v326
      %v328 = vlaneseq
      %v329 = vshrl.u32 %v328, 7
      %v330 = vsub.s32 2, %v329
      %v331 = vrot.slane %v321, %v330
      %v332 = vmul.f32 %v313, %v327
      %v333 = vmul.f32 %v312, %v331
      %334 = vset.pattern.permute.xlu0 3
      %335 = vperm.xlu0 %334, %v223
      %v336 = vpop.permute.xlu0 %335
      %v338 = vmul.f32 %v336, %v332
      %v339 = vmul.f32 %v336, %v333
      %340 = vset.pattern.permute.xlu0 4
      %341 = vperm.xlu0 %340, %v223
      %v342 = vpop.permute.xlu0 %341
      %v344 = vmul.f32 %v342, %v305
      %v345 = vmul.f32 %v342, %v306
      %v346 = vadd.f32 %v338, %v344
      %v347 = vadd.f32 %v339, %v345
      %348 = vrot.lane.b32.xlu0 %v305, 127
      %v349 = vpop.permute.xlu0 %348
      %350 = vrot.lane.b32.xlu0 %v306, 127
      %v351 = vpop.permute.xlu0 %350
      %vm352 = vcmp.lt.s32.totalorder %v232, 127
      %v353 = vsel %vm352, %v349, %v351
      %v354 = vsel %vm352, %v351, %v349
      %v355 = vlaneseq
      %v356 = vshrl.u32 %v355, 7
      %v357 = vsub.s32 3, %v356
      %v358 = vrot.slane %v224, %v357
      %v359 = vlaneseq
      %v360 = vshrl.u32 %v359, 7
      %v361 = vsub.s32 7, %v360
      %v362 = vrot.slane %v224, %v361
      %v365 = vlaneseq
      %v366 = vshrl.u32 %v365, 7
      %v367 = vsub.s32 3, %v366
      %v368 = vrot.slane %v358, %v367
      %v369 = vlaneseq
      %v370 = vshrl.u32 %v369, 7
      %v371 = vsub.s32 3, %v370
      %v372 = vrot.slane %v362, %v371
      %v373 = vmul.f32 %v353, %v368
      %v374 = vmul.f32 %v354, %v372
      %375 = vset.pattern.permute.xlu0 5
      %376 = vperm.xlu0 %375, %v223
      %v377 = vpop.permute.xlu0 %376
      %v379 = vmul.f32 %v377, %v373
      %v380 = vmul.f32 %v377, %v374
      %v381 = vadd.f32 %v346, %v379
      %v382 = vadd.f32 %v347, %v380
      %v383 = vld [vmem:[%s1] sm:$0xff]
      %384 = vset.pattern.permute.xlu0 12
      %385 = vperm.xlu0 %384, %v223
      %v386 = vpop.permute.xlu0 %385
      %vm388 = vcmask 64512
      %v390 = vsel %vm388, %v383, 0
      %392 = vmatprep.subr.mxu0 %v382
      %393 = vmatpush1.msra.mxu0 %v381
      %394 = vmatprep.subr.mxu0 0.0
      %395 = vmatpush1.msra.mxu0 0.0
      %396 = vmatprep.subr.mxu0 0.0
      %397 = vmatpush1.msra.mxu0 0.0
      %398 = vmatprep.subr.mxu0 0.0
      %399 = vmatpush1.msra.mxu0 0.0
      %400 = vmatprep.subr.mxu0 0.0
      %401 = vmatpush1.msra.mxu0 0.0
      %402 = vmatprep.subr.mxu0 0.0
      %403 = vmatpush1.msra.mxu0 0.0
      %404 = vmatprep.subr.mxu0 0.0
      %405 = vmatpush1.msra.mxu0 0.0
      %406 = vmatprep.subr.mxu0 0.0
      %407 = vmatpush1.msra.mxu0 0.0
      %408 = vmatprep.subr.mxu0 0.0
      %409 = vmatpush1.msra.mxu0 0.0
      %410 = vmatprep.subr.mxu0 0.0
      %411 = vmatpush1.msra.mxu0 0.0
      %412 = vmatprep.subr.mxu0 0.0
      %413 = vmatpush1.msra.mxu0 0.0
      %414 = vmatprep.subr.mxu0 0.0
      %415 = vmatpush1.msra.mxu0 0.0
      %416 = vmatprep.subr.mxu0 0.0
      %417 = vmatpush1.msra.mxu0 0.0
      %418 = vmatprep.subr.mxu0 0.0
      %419 = vmatpush1.msra.mxu0 0.0
      %420 = vmatprep.subr.mxu0 0.0
      %421 = vmatpush1.msra.mxu0 0.0
      %422 = vmatprep.subr.mxu0 0.0
      %423 = vmatpush1.msra.mxu0 0.0
      %424 = vmatprep.subr.mxu0 0.0
      %425 = vmatpush1.msra.mxu0 0.0
      %426 = vmatprep.subr.mxu0 0.0
      %427 = vmatpush1.msra.mxu0 0.0
      %428 = vmatprep.subr.mxu0 0.0
      %429 = vmatpush1.msra.mxu0 0.0
      %430 = vmatprep.subr.mxu0 0.0
      %431 = vmatpush1.msra.mxu0 0.0
      %432 = vmatprep.subr.mxu0 0.0
      %433 = vmatpush1.msra.mxu0 0.0
      %434 = vmatprep.subr.mxu0 0.0
      %435 = vmatpush1.msra.mxu0 0.0
      %436 = vmatprep.subr.mxu0 0.0
      %437 = vmatpush1.msra.mxu0 0.0
      %438 = vmatprep.subr.mxu0 0.0
      %439 = vmatpush1.msra.mxu0 0.0
      %440 = vmatprep.subr.mxu0 0.0
      %441 = vmatpush1.msra.mxu0 0.0
      %442 = vmatprep.subr.mxu0 0.0
      %443 = vmatpush1.msra.mxu0 0.0
      %444 = vmatprep.subr.mxu0 0.0
      %445 = vmatpush1.msra.mxu0 0.0
      %446 = vmatprep.subr.mxu0 0.0
      %447 = vmatpush1.msra.mxu0 0.0
      %448 = vmatprep.subr.mxu0 0.0
      %449 = vmatpush1.msra.mxu0 0.0
      %450 = vmatprep.subr.mxu0 0.0
      %451 = vmatpush1.msra.mxu0 0.0
      %452 = vmatprep.subr.mxu0 0.0
      %453 = vmatpush1.msra.mxu0 0.0
      %454 = vmatprep.subr.mxu0 0.0
      %455 = vmatpush1.msra.mxu0 0.0
      %456 = vmatprep.mubr.f32.mxu0 0.0
      %457 = vmatmul.mubr.f32.gmra.mrb[0].mxu0 %v390
      %v458 = vpop.f32.mrb[0].mxu0
      %v459 = vadd.f32 %v386, %v458
      %v460 = vpop.f32.mrb[0].mxu0
      %v461 = vadd.f32 %v386, %v460
      %462 = vdwg.mxu0
      %v463 = vmul.f32 %v459, 0.5
      %v464 = vmul.f32 %v461, 0.5
      %v465 = vmul.f32 %v459, 0.70710677
      %v466 = vmul.f32 %v461, 0.70710677
      %v467 = vand.u32 2147483647, %v465
      %v468 = vand.u32 2147483647, %v466
      %v469 = vmul.f32 %v467, 0.3275911
      %v470 = vmul.f32 %v468, 0.3275911
      %v471 = vadd.f32 %v469, 1.0
      %v472 = vadd.f32 %v470, 1.0
      %v473 = vrcp.pop %v471
      %v474 = vrcp.pop %v472
      %v475 = vmul.f32 %v473, 1.0614054
      %v476 = vmul.f32 %v474, 1.0614054
      %v477 = vadd.f32 %v475, -1.4531521
      %v478 = vadd.f32 %v476, -1.4531521
      %v479 = vmul.f32 %v477, %v473
      %v480 = vmul.f32 %v478, %v474
      %v481 = vadd.f32 %v479, 1.4214138
      %v482 = vadd.f32 %v480, 1.4214138
      %v483 = vmul.f32 %v481, %v473
      %v484 = vmul.f32 %v482, %v474
      %v485 = vadd.f32 %v483, -0.28449672
      %v486 = vadd.f32 %v484, -0.28449672
      %v487 = vmul.f32 %v485, %v473
      %v488 = vmul.f32 %v486, %v474
      %v489 = vadd.f32 %v487, 0.2548296
      %v490 = vadd.f32 %v488, 0.2548296
      %v491 = vmul.f32 %v489, %v473
      %v492 = vmul.f32 %v490, %v474
      %v493 = vsub.f32 0.0, %v467
      %v494 = vsub.f32 0.0, %v468
      %v495 = vmul.f32 %v493, %v467
      %v496 = vmul.f32 %v494, %v468
      %v497 = vmul.f32 %v495, 1.442695
      %v498 = vpow.pop %v497
      %v499 = vmul.f32 %v496, 1.442695
      %v500 = vpow.pop %v499
      %v501 = vmul.f32 %v491, %v498
      %v502 = vmul.f32 %v492, %v500
      %v503 = vsub.f32 1.0, %v501
      %v504 = vsub.f32 1.0, %v502
      %vm505 = vcmp.ge.f32.partialorder %v465, 0.0
      %vm506 = vcmp.ge.f32.partialorder %v466, 0.0
      %v507 = vsub.f32 0.0, %v503
      %v508 = vsub.f32 0.0, %v504
      %v509 = vsel %vm505, %v503, %v507
      %v510 = vsel %vm506, %v504, %v508
      %v511 = vadd.f32 %v509, 1.0
      %v512 = vadd.f32 %v510, 1.0
      %v513 = vmul.f32 %v463, %v511
      %v514 = vmul.f32 %v464, %v512
      %515 = vrot.lane.b32.xlu0 %v513, 16
      %v516 = vpop.permute.xlu0 %515
      %517 = vrot.lane.b32.xlu0 %v514, 16
      %v518 = vpop.permute.xlu0 %517
      %v519 = vsel %vm233, %v516, %v518
      %v520 = vsel %vm233, %v518, %v516
      %v521 = vmul.f32 %v520, %v250
      %v522 = vmul.f32 %v519, %v254
      %523 = vset.pattern.permute.xlu0 6
      %524 = vperm.xlu0 %523, %v223
      %v525 = vpop.permute.xlu0 %524
      %v527 = vmul.f32 %v525, %v521
      %v528 = vmul.f32 %v525, %v522
      %529 = vset.pattern.permute.xlu0 7
      %530 = vperm.xlu0 %529, %v223
      %v531 = vpop.permute.xlu0 %530
      %v533 = vmul.f32 %v531, %v513
      %v534 = vmul.f32 %v531, %v514
      %v535 = vadd.f32 %v527, %v533
      %v536 = vadd.f32 %v528, %v534
      %537 = vrot.lane.b32.xlu0 %v513, 112
      %v538 = vpop.permute.xlu0 %537
      %539 = vrot.lane.b32.xlu0 %v514, 112
      %v540 = vpop.permute.xlu0 %539
      %v541 = vsel %vm276, %v538, %v540
      %v542 = vsel %vm276, %v540, %v538
      %v543 = vmul.f32 %v541, %v292
      %v544 = vmul.f32 %v542, %v296
      %545 = vset.pattern.permute.xlu0 8
      %546 = vperm.xlu0 %545, %v223
      %v547 = vpop.permute.xlu0 %546
      %v549 = vmul.f32 %v547, %v543
      %v550 = vmul.f32 %v547, %v544
      %v551 = vadd.f32 %v535, %v549
      %v552 = vadd.f32 %v536, %v550
      %553 = vrot.lane.b32.xlu0 %v551, 1
      %v554 = vpop.permute.xlu0 %553
      %555 = vrot.lane.b32.xlu0 %v552, 1
      %v556 = vpop.permute.xlu0 %555
      %v557 = vsel %vm311, %v554, %v556
      %v558 = vsel %vm311, %v556, %v554
      %v559 = vmul.f32 %v558, %v327
      %v560 = vmul.f32 %v557, %v331
      %561 = vset.pattern.permute.xlu0 9
      %562 = vperm.xlu0 %561, %v223
      %v563 = vpop.permute.xlu0 %562
      %v565 = vmul.f32 %v563, %v559
      %v566 = vmul.f32 %v563, %v560
      %567 = vset.pattern.permute.xlu0 10
      %568 = vperm.xlu0 %567, %v223
      %v569 = vpop.permute.xlu0 %568
      %v571 = vmul.f32 %v569, %v551
      %v572 = vmul.f32 %v569, %v552
      %v573 = vadd.f32 %v565, %v571
      %v574 = vadd.f32 %v566, %v572
      %575 = vrot.lane.b32.xlu0 %v551, 127
      %v576 = vpop.permute.xlu0 %575
      %577 = vrot.lane.b32.xlu0 %v552, 127
      %v578 = vpop.permute.xlu0 %577
      %v579 = vsel %vm352, %v576, %v578
      %v580 = vsel %vm352, %v578, %v576
      %v581 = vmul.f32 %v579, %v368
      %v582 = vmul.f32 %v580, %v372
      %583 = vset.pattern.permute.xlu0 11
      %584 = vperm.xlu0 %583, %v223
      %v585 = vpop.permute.xlu0 %584
      %v587 = vmul.f32 %v585, %v581
      %v588 = vmul.f32 %v585, %v582
      %v589 = vadd.f32 %v573, %v587
      %v590 = vadd.f32 %v574, %v588
      %s591 = scalar_lea.vmem %s1, 8
      %v592 = vld [vmem:[%s591] sm:$0xff]
      %593 = vset.pattern.permute.xlu0 13
      %594 = vperm.xlu0 %593, %v223
      %v595 = vpop.permute.xlu0 %594
      %v598 = vsel %vm388, %v592, 0
      %600 = vmatprep.subr.mxu0 %v590
      %601 = vmatpush1.msra.mxu0 %v589
      %602 = vmatprep.subr.mxu0 0.0
      %603 = vmatpush1.msra.mxu0 0.0
      %604 = vmatprep.subr.mxu0 0.0
      %605 = vmatpush1.msra.mxu0 0.0
      %606 = vmatprep.subr.mxu0 0.0
      %607 = vmatpush1.msra.mxu0 0.0
      %608 = vmatprep.subr.mxu0 0.0
      %609 = vmatpush1.msra.mxu0 0.0
      %610 = vmatprep.subr.mxu0 0.0
      %611 = vmatpush1.msra.mxu0 0.0
      %612 = vmatprep.subr.mxu0 0.0
      %613 = vmatpush1.msra.mxu0 0.0
      %614 = vmatprep.subr.mxu0 0.0
      %615 = vmatpush1.msra.mxu0 0.0
      %616 = vmatprep.subr.mxu0 0.0
      %617 = vmatpush1.msra.mxu0 0.0
      %618 = vmatprep.subr.mxu0 0.0
      %619 = vmatpush1.msra.mxu0 0.0
      %620 = vmatprep.subr.mxu0 0.0
      %621 = vmatpush1.msra.mxu0 0.0
      %622 = vmatprep.subr.mxu0 0.0
      %623 = vmatpush1.msra.mxu0 0.0
      %624 = vmatprep.subr.mxu0 0.0
      %625 = vmatpush1.msra.mxu0 0.0
      %626 = vmatprep.subr.mxu0 0.0
      %627 = vmatpush1.msra.mxu0 0.0
      %628 = vmatprep.subr.mxu0 0.0
      %629 = vmatpush1.msra.mxu0 0.0
      %630 = vmatprep.subr.mxu0 0.0
      %631 = vmatpush1.msra.mxu0 0.0
      %632 = vmatprep.subr.mxu0 0.0
      %633 = vmatpush1.msra.mxu0 0.0
      %634 = vmatprep.subr.mxu0 0.0
      %635 = vmatpush1.msra.mxu0 0.0
      %636 = vmatprep.subr.mxu0 0.0
      %637 = vmatpush1.msra.mxu0 0.0
      %638 = vmatprep.subr.mxu0 0.0
      %639 = vmatpush1.msra.mxu0 0.0
      %640 = vmatprep.subr.mxu0 0.0
      %641 = vmatpush1.msra.mxu0 0.0
      %642 = vmatprep.subr.mxu0 0.0
      %643 = vmatpush1.msra.mxu0 0.0
      %644 = vmatprep.subr.mxu0 0.0
      %645 = vmatpush1.msra.mxu0 0.0
      %646 = vmatprep.subr.mxu0 0.0
      %647 = vmatpush1.msra.mxu0 0.0
      %648 = vmatprep.subr.mxu0 0.0
      %649 = vmatpush1.msra.mxu0 0.0
      %650 = vmatprep.subr.mxu0 0.0
      %651 = vmatpush1.msra.mxu0 0.0
      %652 = vmatprep.subr.mxu0 0.0
      %653 = vmatpush1.msra.mxu0 0.0
      %654 = vmatprep.subr.mxu0 0.0
      %655 = vmatpush1.msra.mxu0 0.0
      %656 = vmatprep.subr.mxu0 0.0
      %657 = vmatpush1.msra.mxu0 0.0
      %658 = vmatprep.subr.mxu0 0.0
      %659 = vmatpush1.msra.mxu0 0.0
      %660 = vmatprep.subr.mxu0 0.0
      %661 = vmatpush1.msra.mxu0 0.0
      %662 = vmatprep.subr.mxu0 0.0
      %663 = vmatpush1.msra.mxu0 0.0
      %664 = vmatprep.mubr.f32.mxu0 0.0
      %665 = vmatmul.mubr.f32.gmra.mrb[0].mxu0 %v598
      %v666 = vpop.f32.mrb[0].mxu0
      %v667 = vadd.f32 %v595, %v666
      %v668 = vpop.f32.mrb[0].mxu0
      %v669 = vadd.f32 %v595, %v668
      %670 = vdwg.mxu0
      %v671 = vmul.f32 %v667, 0.5
      %v672 = vmul.f32 %v669, 0.5
      %v673 = vmul.f32 %v667, 0.70710677
      %v674 = vmul.f32 %v669, 0.70710677
      %v675 = vand.u32 2147483647, %v673
      %v676 = vand.u32 2147483647, %v674
      %v677 = vmul.f32 %v675, 0.3275911
      %v678 = vmul.f32 %v676, 0.3275911
      %v679 = vadd.f32 %v677, 1.0
      %v680 = vadd.f32 %v678, 1.0
      %v681 = vrcp.pop %v679
      %v682 = vrcp.pop %v680
      %v683 = vmul.f32 %v681, 1.0614054
      %v684 = vmul.f32 %v682, 1.0614054
      %v685 = vadd.f32 %v683, -1.4531521
      %v686 = vadd.f32 %v684, -1.4531521
      %v687 = vmul.f32 %v685, %v681
      %v688 = vmul.f32 %v686, %v682
      %v689 = vadd.f32 %v687, 1.4214138
      %v690 = vadd.f32 %v688, 1.4214138
      %v691 = vmul.f32 %v689, %v681
      %v692 = vmul.f32 %v690, %v682
      %v693 = vadd.f32 %v691, -0.28449672
      %v694 = vadd.f32 %v692, -0.28449672
      %v695 = vmul.f32 %v693, %v681
      %v696 = vmul.f32 %v694, %v682
      %v697 = vadd.f32 %v695, 0.2548296
      %v698 = vadd.f32 %v696, 0.2548296
      %v699 = vmul.f32 %v697, %v681
      %v700 = vmul.f32 %v698, %v682
      %v701 = vsub.f32 0.0, %v675
      %v702 = vsub.f32 0.0, %v676
      %v703 = vmul.f32 %v701, %v675
      %v704 = vmul.f32 %v702, %v676
      %v705 = vmul.f32 %v703, 1.442695
      %v706 = vpow.pop %v705
      %v707 = vmul.f32 %v704, 1.442695
      %v708 = vpow.pop %v707
      %v709 = vmul.f32 %v699, %v706
      %v710 = vmul.f32 %v700, %v708
      %v711 = vsub.f32 1.0, %v709
      %v712 = vsub.f32 1.0, %v710
      %vm713 = vcmp.ge.f32.partialorder %v673, 0.0
      %vm714 = vcmp.ge.f32.partialorder %v674, 0.0
      %v715 = vsub.f32 0.0, %v711
      %v716 = vsub.f32 0.0, %v712
      %v717 = vsel %vm713, %v711, %v715
      %v718 = vsel %vm714, %v712, %v716
      %v719 = vadd.f32 %v717, 1.0
      %v720 = vadd.f32 %v718, 1.0
      %v721 = vmul.f32 %v671, %v719
      %v722 = vmul.f32 %v672, %v720
      %v723 = vadd.f32 %v721, %v225
      %v724 = vadd.f32 %v722, %v226
      %725 = vset.pattern.permute.xlu0 14
      %726 = vperm.xlu0 %725, %v223
      %v727 = vpop.permute.xlu0 %726
      %v729 = vmul.f32 %v727, %v723
      %v730 = vmul.f32 %v727, %v724
      %731 = vset.pattern.permute.xlu0 15
      %732 = vperm.xlu0 %731, %v223
      %v733 = vpop.permute.xlu0 %732
      %v735 = vadd.f32 %v729, %v733
      %v736 = vadd.f32 %v730, %v733
      %737 = vrot.lane.b32.xlu0 %v225, 127
      %v738 = vpop.permute.xlu0 %737
      %739 = vrot.lane.b32.xlu0 %v226, 127
      %v740 = vpop.permute.xlu0 %739
      %v741 = vsel %vm352, %v738, %v740
      %v742 = vsel %vm352, %v740, %v738
      %v743 = vmax.f32 %v225, %v741
      %v744 = vmax.f32 %v226, %v742
      %745 = vrot.lane.b32.xlu0 %v743, 112
      %v746 = vpop.permute.xlu0 %745
      %747 = vrot.lane.b32.xlu0 %v744, 112
      %v748 = vpop.permute.xlu0 %747
      %v749 = vsel %vm276, %v746, %v748
      %v750 = vsel %vm276, %v748, %v746
      %v751 = vmax.f32 %v743, %v749
      %v752 = vmax.f32 %v744, %v750
      %753 = vrot.lane.b32.xlu0 %v735, 127
      %v754 = vpop.permute.xlu0 %753
      %755 = vrot.lane.b32.xlu0 %v736, 127
      %v756 = vpop.permute.xlu0 %755
      %v757 = vsel %vm352, %v754, %v756
      %v758 = vsel %vm352, %v756, %v754
      %v759 = vmax.f32 %v735, %v757
      %v760 = vmax.f32 %v736, %v758
      %761 = vrot.lane.b32.xlu0 %v759, 112
      %v762 = vpop.permute.xlu0 %761
      %763 = vrot.lane.b32.xlu0 %v760, 112
      %v764 = vpop.permute.xlu0 %763
      %v765 = vsel %vm276, %v762, %v764
      %v766 = vsel %vm276, %v764, %v762
      %v767 = vmax.f32 %v759, %v765
      %v768 = vmax.f32 %v760, %v766
      %v769 = vadd.f32 %v751, %v767
      %v770 = vadd.f32 %v752, %v768
      %v771 = vld [vmem:[%s4] sm:$0xff]
      %v772 = vld [vmem:[%s4 + $0x8] sm:$0xff]
      %vm773 = vcmask 130048
      %v775 = vsel %vm773, %v769, 0
      %777 = vmatprep.subr.mxu0 0.0
      %778 = vmatpush1.msra.mxu0 %v771
      %779 = vmatprep.subr.mxu0 0.0
      %780 = vmatpush1.msra.mxu0 %v772
      %781 = vmatprep.subr.mxu0 0.0
      %782 = vmatpush1.msra.mxu0 0.0
      %783 = vmatprep.subr.mxu0 0.0
      %784 = vmatpush1.msra.mxu0 0.0
      %785 = vmatprep.subr.mxu0 0.0
      %786 = vmatpush1.msra.mxu0 0.0
      %787 = vmatprep.subr.mxu0 0.0
      %788 = vmatpush1.msra.mxu0 0.0
      %789 = vmatprep.subr.mxu0 0.0
      %790 = vmatpush1.msra.mxu0 0.0
      %791 = vmatprep.subr.mxu0 0.0
      %792 = vmatpush1.msra.mxu0 0.0
      %793 = vmatprep.subr.mxu0 0.0
      %794 = vmatpush1.msra.mxu0 0.0
      %795 = vmatprep.subr.mxu0 0.0
      %796 = vmatpush1.msra.mxu0 0.0
      %797 = vmatprep.subr.mxu0 0.0
      %798 = vmatpush1.msra.mxu0 0.0
      %799 = vmatprep.subr.mxu0 0.0
      %800 = vmatpush1.msra.mxu0 0.0
      %801 = vmatprep.subr.mxu0 0.0
      %802 = vmatpush1.msra.mxu0 0.0
      %803 = vmatprep.subr.mxu0 0.0
      %804 = vmatpush1.msra.mxu0 0.0
      %805 = vmatprep.subr.mxu0 0.0
      %806 = vmatpush1.msra.mxu0 0.0
      %807 = vmatprep.subr.mxu0 0.0
      %808 = vmatpush1.msra.mxu0 0.0
      %809 = vmatprep.subr.mxu0 0.0
      %810 = vmatpush1.msra.mxu0 0.0
      %811 = vmatprep.subr.mxu0 0.0
      %812 = vmatpush1.msra.mxu0 0.0
      %813 = vmatprep.subr.mxu0 0.0
      %814 = vmatpush1.msra.mxu0 0.0
      %815 = vmatprep.subr.mxu0 0.0
      %816 = vmatpush1.msra.mxu0 0.0
      %817 = vmatprep.subr.mxu0 0.0
      %818 = vmatpush1.msra.mxu0 0.0
      %819 = vmatprep.subr.mxu0 0.0
      %820 = vmatpush1.msra.mxu0 0.0
      %821 = vmatprep.subr.mxu0 0.0
      %822 = vmatpush1.msra.mxu0 0.0
      %823 = vmatprep.subr.mxu0 0.0
      %824 = vmatpush1.msra.mxu0 0.0
      %825 = vmatprep.subr.mxu0 0.0
      %826 = vmatpush1.msra.mxu0 0.0
      %827 = vmatprep.subr.mxu0 0.0
      %828 = vmatpush1.msra.mxu0 0.0
      %829 = vmatprep.subr.mxu0 0.0
      %830 = vmatpush1.msra.mxu0 0.0
      %831 = vmatprep.subr.mxu0 0.0
      %832 = vmatpush1.msra.mxu0 0.0
      %833 = vmatprep.subr.mxu0 0.0
      %834 = vmatpush1.msra.mxu0 0.0
      %835 = vmatprep.subr.mxu0 0.0
      %836 = vmatpush1.msra.mxu0 0.0
      %837 = vmatprep.subr.mxu0 0.0
      %838 = vmatpush1.msra.mxu0 0.0
      %839 = vmatprep.subr.mxu0 0.0
      %840 = vmatpush1.msra.mxu0 0.0
      %841 = vmatprep.mubr.f32.mxu0 0.0
      %842 = vmatmul.mubr.f32.gmra.mrb[0].mxu0 %v775
      %v843 = vpop.f32.mrb[0].mxu0
      %v844 = vadd.f32 0.0, %v843
      %v845 = vpop.f32.mrb[0].mxu0
      %846 = vdwg.mxu0
      %847 = vrot.lane.b32.xlu0 %v769, 96
      %v848 = vpop.permute.xlu0 %847
      %v849 = vsel %vm773, %v848, 0
      %851 = vmatprep.subr.mxu0 0.0
      %852 = vmatpush1.msra.mxu0 %v771
      %853 = vmatprep.subr.mxu0 0.0
      %854 = vmatpush1.msra.mxu0 %v772
      %855 = vmatprep.subr.mxu0 0.0
      %856 = vmatpush1.msra.mxu0 0.0
      %857 = vmatprep.subr.mxu0 0.0
      %858 = vmatpush1.msra.mxu0 0.0
      %859 = vmatprep.subr.mxu0 0.0
      %860 = vmatpush1.msra.mxu0 0.0
      %861 = vmatprep.subr.mxu0 0.0
      %862 = vmatpush1.msra.mxu0 0.0
      %863 = vmatprep.subr.mxu0 0.0
      %864 = vmatpush1.msra.mxu0 0.0
      %865 = vmatprep.subr.mxu0 0.0
      %866 = vmatpush1.msra.mxu0 0.0
      %867 = vmatprep.subr.mxu0 0.0
      %868 = vmatpush1.msra.mxu0 0.0
      %869 = vmatprep.subr.mxu0 0.0
      %870 = vmatpush1.msra.mxu0 0.0
      %871 = vmatprep.subr.mxu0 0.0
      %872 = vmatpush1.msra.mxu0 0.0
      %873 = vmatprep.subr.mxu0 0.0
      %874 = vmatpush1.msra.mxu0 0.0
      %875 = vmatprep.subr.mxu0 0.0
      %876 = vmatpush1.msra.mxu0 0.0
      %877 = vmatprep.subr.mxu0 0.0
      %878 = vmatpush1.msra.mxu0 0.0
      %879 = vmatprep.subr.mxu0 0.0
      %880 = vmatpush1.msra.mxu0 0.0
      %881 = vmatprep.subr.mxu0 0.0
      %882 = vmatpush1.msra.mxu0 0.0
      %883 = vmatprep.subr.mxu0 0.0
      %884 = vmatpush1.msra.mxu0 0.0
      %885 = vmatprep.subr.mxu0 0.0
      %886 = vmatpush1.msra.mxu0 0.0
      %887 = vmatprep.subr.mxu0 0.0
      %888 = vmatpush1.msra.mxu0 0.0
      %889 = vmatprep.subr.mxu0 0.0
      %890 = vmatpush1.msra.mxu0 0.0
      %891 = vmatprep.subr.mxu0 0.0
      %892 = vmatpush1.msra.mxu0 0.0
      %893 = vmatprep.subr.mxu0 0.0
      %894 = vmatpush1.msra.mxu0 0.0
      %895 = vmatprep.subr.mxu0 0.0
      %896 = vmatpush1.msra.mxu0 0.0
      %897 = vmatprep.subr.mxu0 0.0
      %898 = vmatpush1.msra.mxu0 0.0
      %899 = vmatprep.subr.mxu0 0.0
      %900 = vmatpush1.msra.mxu0 0.0
      %901 = vmatprep.subr.mxu0 0.0
      %902 = vmatpush1.msra.mxu0 0.0
      %903 = vmatprep.subr.mxu0 0.0
      %904 = vmatpush1.msra.mxu0 0.0
      %905 = vmatprep.subr.mxu0 0.0
      %906 = vmatpush1.msra.mxu0 0.0
      %907 = vmatprep.subr.mxu0 0.0
      %908 = vmatpush1.msra.mxu0 0.0
      %909 = vmatprep.subr.mxu0 0.0
      %910 = vmatpush1.msra.mxu0 0.0
      %911 = vmatprep.subr.mxu0 0.0
      %912 = vmatpush1.msra.mxu0 0.0
      %913 = vmatprep.subr.mxu0 0.0
      %914 = vmatpush1.msra.mxu0 0.0
      %915 = vmatprep.mubr.f32.mxu0 0.0
      %916 = vmatmul.mubr.f32.gmra.mrb[0].mxu0 %v849
      %v917 = vpop.f32.mrb[0].mxu0
      %v918 = vadd.f32 0.0, %v917
      %v919 = vpop.f32.mrb[0].mxu0
      %920 = vdwg.mxu0
      %921 = vrot.lane.b32.xlu0 %v769, 64
      %v922 = vpop.permute.xlu0 %921
      %v923 = vsel %vm773, %v922, 0
      %925 = vmatprep.subr.mxu0 0.0
      %926 = vmatpush1.msra.mxu0 %v771
      %927 = vmatprep.subr.mxu0 0.0
      %928 = vmatpush1.msra.mxu0 %v772
      %929 = vmatprep.subr.mxu0 0.0
      %930 = vmatpush1.msra.mxu0 0.0
      %931 = vmatprep.subr.mxu0 0.0
      %932 = vmatpush1.msra.mxu0 0.0
      %933 = vmatprep.subr.mxu0 0.0
      %934 = vmatpush1.msra.mxu0 0.0
      %935 = vmatprep.subr.mxu0 0.0
      %936 = vmatpush1.msra.mxu0 0.0
      %937 = vmatprep.subr.mxu0 0.0
      %938 = vmatpush1.msra.mxu0 0.0
      %939 = vmatprep.subr.mxu0 0.0
      %940 = vmatpush1.msra.mxu0 0.0
      %941 = vmatprep.subr.mxu0 0.0
      %942 = vmatpush1.msra.mxu0 0.0
      %943 = vmatprep.subr.mxu0 0.0
      %944 = vmatpush1.msra.mxu0 0.0
      %945 = vmatprep.subr.mxu0 0.0
      %946 = vmatpush1.msra.mxu0 0.0
      %947 = vmatprep.subr.mxu0 0.0
      %948 = vmatpush1.msra.mxu0 0.0
      %949 = vmatprep.subr.mxu0 0.0
      %950 = vmatpush1.msra.mxu0 0.0
      %951 = vmatprep.subr.mxu0 0.0
      %952 = vmatpush1.msra.mxu0 0.0
      %953 = vmatprep.subr.mxu0 0.0
      %954 = vmatpush1.msra.mxu0 0.0
      %955 = vmatprep.subr.mxu0 0.0
      %956 = vmatpush1.msra.mxu0 0.0
      %957 = vmatprep.subr.mxu0 0.0
      %958 = vmatpush1.msra.mxu0 0.0
      %959 = vmatprep.subr.mxu0 0.0
      %960 = vmatpush1.msra.mxu0 0.0
      %961 = vmatprep.subr.mxu0 0.0
      %962 = vmatpush1.msra.mxu0 0.0
      %963 = vmatprep.subr.mxu0 0.0
      %964 = vmatpush1.msra.mxu0 0.0
      %965 = vmatprep.subr.mxu0 0.0
      %966 = vmatpush1.msra.mxu0 0.0
      %967 = vmatprep.subr.mxu0 0.0
      %968 = vmatpush1.msra.mxu0 0.0
      %969 = vmatprep.subr.mxu0 0.0
      %970 = vmatpush1.msra.mxu0 0.0
      %971 = vmatprep.subr.mxu0 0.0
      %972 = vmatpush1.msra.mxu0 0.0
      %973 = vmatprep.subr.mxu0 0.0
      %974 = vmatpush1.msra.mxu0 0.0
      %975 = vmatprep.subr.mxu0 0.0
      %976 = vmatpush1.msra.mxu0 0.0
      %977 = vmatprep.subr.mxu0 0.0
      %978 = vmatpush1.msra.mxu0 0.0
      %979 = vmatprep.subr.mxu0 0.0
      %980 = vmatpush1.msra.mxu0 0.0
      %981 = vmatprep.subr.mxu0 0.0
      %982 = vmatpush1.msra.mxu0 0.0
      %983 = vmatprep.subr.mxu0 0.0
      %984 = vmatpush1.msra.mxu0 0.0
      %985 = vmatprep.subr.mxu0 0.0
      %986 = vmatpush1.msra.mxu0 0.0
      %987 = vmatprep.subr.mxu0 0.0
      %988 = vmatpush1.msra.mxu0 0.0
      %989 = vmatprep.mubr.f32.mxu0 0.0
      %990 = vmatmul.mubr.f32.gmra.mrb[0].mxu0 %v923
      %v991 = vpop.f32.mrb[0].mxu0
      %v992 = vadd.f32 0.0, %v991
      %v993 = vpop.f32.mrb[0].mxu0
      %994 = vdwg.mxu0
      %995 = vrot.lane.b32.xlu0 %v769, 32
      %v996 = vpop.permute.xlu0 %995
      %v997 = vsel %vm773, %v996, 0
      %999 = vmatprep.subr.mxu0 0.0
      %1000 = vmatpush1.msra.mxu0 %v771
      %1001 = vmatprep.subr.mxu0 0.0
      %1002 = vmatpush1.msra.mxu0 %v772
      %1003 = vmatprep.subr.mxu0 0.0
      %1004 = vmatpush1.msra.mxu0 0.0
      %1005 = vmatprep.subr.mxu0 0.0
      %1006 = vmatpush1.msra.mxu0 0.0
      %1007 = vmatprep.subr.mxu0 0.0
      %1008 = vmatpush1.msra.mxu0 0.0
      %1009 = vmatprep.subr.mxu0 0.0
      %1010 = vmatpush1.msra.mxu0 0.0
      %1011 = vmatprep.subr.mxu0 0.0
      %1012 = vmatpush1.msra.mxu0 0.0
      %1013 = vmatprep.subr.mxu0 0.0
      %1014 = vmatpush1.msra.mxu0 0.0
      %1015 = vmatprep.subr.mxu0 0.0
      %1016 = vmatpush1.msra.mxu0 0.0
      %1017 = vmatprep.subr.mxu0 0.0
      %1018 = vmatpush1.msra.mxu0 0.0
      %1019 = vmatprep.subr.mxu0 0.0
      %1020 = vmatpush1.msra.mxu0 0.0
      %1021 = vmatprep.subr.mxu0 0.0
      %1022 = vmatpush1.msra.mxu0 0.0
      %1023 = vmatprep.subr.mxu0 0.0
      %1024 = vmatpush1.msra.mxu0 0.0
      %1025 = vmatprep.subr.mxu0 0.0
      %1026 = vmatpush1.msra.mxu0 0.0
      %1027 = vmatprep.subr.mxu0 0.0
      %1028 = vmatpush1.msra.mxu0 0.0
      %1029 = vmatprep.subr.mxu0 0.0
      %1030 = vmatpush1.msra.mxu0 0.0
      %1031 = vmatprep.subr.mxu0 0.0
      %1032 = vmatpush1.msra.mxu0 0.0
      %1033 = vmatprep.subr.mxu0 0.0
      %1034 = vmatpush1.msra.mxu0 0.0
      %1035 = vmatprep.subr.mxu0 0.0
      %1036 = vmatpush1.msra.mxu0 0.0
      %1037 = vmatprep.subr.mxu0 0.0
      %1038 = vmatpush1.msra.mxu0 0.0
      %1039 = vmatprep.subr.mxu0 0.0
      %1040 = vmatpush1.msra.mxu0 0.0
      %1041 = vmatprep.subr.mxu0 0.0
      %1042 = vmatpush1.msra.mxu0 0.0
      %1043 = vmatprep.subr.mxu0 0.0
      %1044 = vmatpush1.msra.mxu0 0.0
      %1045 = vmatprep.subr.mxu0 0.0
      %1046 = vmatpush1.msra.mxu0 0.0
      %1047 = vmatprep.subr.mxu0 0.0
      %1048 = vmatpush1.msra.mxu0 0.0
      %1049 = vmatprep.subr.mxu0 0.0
      %1050 = vmatpush1.msra.mxu0 0.0
      %1051 = vmatprep.subr.mxu0 0.0
      %1052 = vmatpush1.msra.mxu0 0.0
      %1053 = vmatprep.subr.mxu0 0.0
      %1054 = vmatpush1.msra.mxu0 0.0
      %1055 = vmatprep.subr.mxu0 0.0
      %1056 = vmatpush1.msra.mxu0 0.0
      %1057 = vmatprep.subr.mxu0 0.0
      %1058 = vmatpush1.msra.mxu0 0.0
      %1059 = vmatprep.subr.mxu0 0.0
      %1060 = vmatpush1.msra.mxu0 0.0
      %1061 = vmatprep.subr.mxu0 0.0
      %1062 = vmatpush1.msra.mxu0 0.0
      %1063 = vmatprep.mubr.f32.mxu0 0.0
      %1064 = vmatmul.mubr.f32.gmra.mrb[0].mxu0 %v997
      %v1065 = vpop.f32.mrb[0].mxu0
      %v1066 = vadd.f32 0.0, %v1065
      %v1067 = vpop.f32.mrb[0].mxu0
      %1068 = vdwg.mxu0
      %v1070 = vsel %vm773, %v770, 0
      %1072 = vmatprep.subr.mxu0 0.0
      %1073 = vmatpush1.msra.mxu0 %v771
      %1074 = vmatprep.subr.mxu0 0.0
      %1075 = vmatpush1.msra.mxu0 %v772
      %1076 = vmatprep.subr.mxu0 0.0
      %1077 = vmatpush1.msra.mxu0 0.0
      %1078 = vmatprep.subr.mxu0 0.0
      %1079 = vmatpush1.msra.mxu0 0.0
      %1080 = vmatprep.subr.mxu0 0.0
      %1081 = vmatpush1.msra.mxu0 0.0
      %1082 = vmatprep.subr.mxu0 0.0
      %1083 = vmatpush1.msra.mxu0 0.0
      %1084 = vmatprep.subr.mxu0 0.0
      %1085 = vmatpush1.msra.mxu0 0.0
      %1086 = vmatprep.subr.mxu0 0.0
      %1087 = vmatpush1.msra.mxu0 0.0
      %1088 = vmatprep.subr.mxu0 0.0
      %1089 = vmatpush1.msra.mxu0 0.0
      %1090 = vmatprep.subr.mxu0 0.0
      %1091 = vmatpush1.msra.mxu0 0.0
      %1092 = vmatprep.subr.mxu0 0.0
      %1093 = vmatpush1.msra.mxu0 0.0
      %1094 = vmatprep.subr.mxu0 0.0
      %1095 = vmatpush1.msra.mxu0 0.0
      %1096 = vmatprep.subr.mxu0 0.0
      %1097 = vmatpush1.msra.mxu0 0.0
      %1098 = vmatprep.subr.mxu0 0.0
      %1099 = vmatpush1.msra.mxu0 0.0
      %1100 = vmatprep.subr.mxu0 0.0
      %1101 = vmatpush1.msra.mxu0 0.0
      %1102 = vmatprep.subr.mxu0 0.0
      %1103 = vmatpush1.msra.mxu0 0.0
      %1104 = vmatprep.subr.mxu0 0.0
      %1105 = vmatpush1.msra.mxu0 0.0
      %1106 = vmatprep.subr.mxu0 0.0
      %1107 = vmatpush1.msra.mxu0 0.0
      %1108 = vmatprep.subr.mxu0 0.0
      %1109 = vmatpush1.msra.mxu0 0.0
      %1110 = vmatprep.subr.mxu0 0.0
      %1111 = vmatpush1.msra.mxu0 0.0
      %1112 = vmatprep.subr.mxu0 0.0
      %1113 = vmatpush1.msra.mxu0 0.0
      %1114 = vmatprep.subr.mxu0 0.0
      %1115 = vmatpush1.msra.mxu0 0.0
      %1116 = vmatprep.subr.mxu0 0.0
      %1117 = vmatpush1.msra.mxu0 0.0
      %1118 = vmatprep.subr.mxu0 0.0
      %1119 = vmatpush1.msra.mxu0 0.0
      %1120 = vmatprep.subr.mxu0 0.0
      %1121 = vmatpush1.msra.mxu0 0.0
      %1122 = vmatprep.subr.mxu0 0.0
      %1123 = vmatpush1.msra.mxu0 0.0
      %1124 = vmatprep.subr.mxu0 0.0
      %1125 = vmatpush1.msra.mxu0 0.0
      %1126 = vmatprep.subr.mxu0 0.0
      %1127 = vmatpush1.msra.mxu0 0.0
      %1128 = vmatprep.subr.mxu0 0.0
      %1129 = vmatpush1.msra.mxu0 0.0
      %1130 = vmatprep.subr.mxu0 0.0
      %1131 = vmatpush1.msra.mxu0 0.0
      %1132 = vmatprep.subr.mxu0 0.0
      %1133 = vmatpush1.msra.mxu0 0.0
      %1134 = vmatprep.subr.mxu0 0.0
      %1135 = vmatpush1.msra.mxu0 0.0
      %1136 = vmatprep.mubr.f32.mxu0 0.0
      %1137 = vmatmul.mubr.f32.gmra.mrb[0].mxu0 %v1070
      %v1138 = vpop.f32.mrb[0].mxu0
      %v1139 = vadd.f32 0.0, %v1138
      %v1140 = vpop.f32.mrb[0].mxu0
      %1141 = vdwg.mxu0
      %1142 = vrot.lane.b32.xlu0 %v770, 96
      %v1143 = vpop.permute.xlu0 %1142
      %v1144 = vsel %vm773, %v1143, 0
      %1146 = vmatprep.subr.mxu0 0.0
      %1147 = vmatpush1.msra.mxu0 %v771
      %1148 = vmatprep.subr.mxu0 0.0
      %1149 = vmatpush1.msra.mxu0 %v772
      %1150 = vmatprep.subr.mxu0 0.0
      %1151 = vmatpush1.msra.mxu0 0.0
      %1152 = vmatprep.subr.mxu0 0.0
      %1153 = vmatpush1.msra.mxu0 0.0
      %1154 = vmatprep.subr.mxu0 0.0
      %1155 = vmatpush1.msra.mxu0 0.0
      %1156 = vmatprep.subr.mxu0 0.0
      %1157 = vmatpush1.msra.mxu0 0.0
      %1158 = vmatprep.subr.mxu0 0.0
      %1159 = vmatpush1.msra.mxu0 0.0
      %1160 = vmatprep.subr.mxu0 0.0
      %1161 = vmatpush1.msra.mxu0 0.0
      %1162 = vmatprep.subr.mxu0 0.0
      %1163 = vmatpush1.msra.mxu0 0.0
      %1164 = vmatprep.subr.mxu0 0.0
      %1165 = vmatpush1.msra.mxu0 0.0
      %1166 = vmatprep.subr.mxu0 0.0
      %1167 = vmatpush1.msra.mxu0 0.0
      %1168 = vmatprep.subr.mxu0 0.0
      %1169 = vmatpush1.msra.mxu0 0.0
      %1170 = vmatprep.subr.mxu0 0.0
      %1171 = vmatpush1.msra.mxu0 0.0
      %1172 = vmatprep.subr.mxu0 0.0
      %1173 = vmatpush1.msra.mxu0 0.0
      %1174 = vmatprep.subr.mxu0 0.0
      %1175 = vmatpush1.msra.mxu0 0.0
      %1176 = vmatprep.subr.mxu0 0.0
      %1177 = vmatpush1.msra.mxu0 0.0
      %1178 = vmatprep.subr.mxu0 0.0
      %1179 = vmatpush1.msra.mxu0 0.0
      %1180 = vmatprep.subr.mxu0 0.0
      %1181 = vmatpush1.msra.mxu0 0.0
      %1182 = vmatprep.subr.mxu0 0.0
      %1183 = vmatpush1.msra.mxu0 0.0
      %1184 = vmatprep.subr.mxu0 0.0
      %1185 = vmatpush1.msra.mxu0 0.0
      %1186 = vmatprep.subr.mxu0 0.0
      %1187 = vmatpush1.msra.mxu0 0.0
      %1188 = vmatprep.subr.mxu0 0.0
      %1189 = vmatpush1.msra.mxu0 0.0
      %1190 = vmatprep.subr.mxu0 0.0
      %1191 = vmatpush1.msra.mxu0 0.0
      %1192 = vmatprep.subr.mxu0 0.0
      %1193 = vmatpush1.msra.mxu0 0.0
      %1194 = vmatprep.subr.mxu0 0.0
      %1195 = vmatpush1.msra.mxu0 0.0
      %1196 = vmatprep.subr.mxu0 0.0
      %1197 = vmatpush1.msra.mxu0 0.0
      %1198 = vmatprep.subr.mxu0 0.0
      %1199 = vmatpush1.msra.mxu0 0.0
      %1200 = vmatprep.subr.mxu0 0.0
      %1201 = vmatpush1.msra.mxu0 0.0
      %1202 = vmatprep.subr.mxu0 0.0
      %1203 = vmatpush1.msra.mxu0 0.0
      %1204 = vmatprep.subr.mxu0 0.0
      %1205 = vmatpush1.msra.mxu0 0.0
      %1206 = vmatprep.subr.mxu0 0.0
      %1207 = vmatpush1.msra.mxu0 0.0
      %1208 = vmatprep.subr.mxu0 0.0
      %1209 = vmatpush1.msra.mxu0 0.0
      %1210 = vmatprep.mubr.f32.mxu0 0.0
      %1211 = vmatmul.mubr.f32.gmra.mrb[0].mxu0 %v1144
      %v1212 = vpop.f32.mrb[0].mxu0
      %v1213 = vadd.f32 0.0, %v1212
      %v1214 = vpop.f32.mrb[0].mxu0
      %1215 = vdwg.mxu0
      %1216 = vrot.lane.b32.xlu0 %v770, 64
      %v1217 = vpop.permute.xlu0 %1216
      %v1218 = vsel %vm773, %v1217, 0
      %1220 = vmatprep.subr.mxu0 0.0
      %1221 = vmatpush1.msra.mxu0 %v771
      %1222 = vmatprep.subr.mxu0 0.0
      %1223 = vmatpush1.msra.mxu0 %v772
      %1224 = vmatprep.subr.mxu0 0.0
      %1225 = vmatpush1.msra.mxu0 0.0
      %1226 = vmatprep.subr.mxu0 0.0
      %1227 = vmatpush1.msra.mxu0 0.0
      %1228 = vmatprep.subr.mxu0 0.0
      %1229 = vmatpush1.msra.mxu0 0.0
      %1230 = vmatprep.subr.mxu0 0.0
      %1231 = vmatpush1.msra.mxu0 0.0
      %1232 = vmatprep.subr.mxu0 0.0
      %1233 = vmatpush1.msra.mxu0 0.0
      %1234 = vmatprep.subr.mxu0 0.0
      %1235 = vmatpush1.msra.mxu0 0.0
      %1236 = vmatprep.subr.mxu0 0.0
      %1237 = vmatpush1.msra.mxu0 0.0
      %1238 = vmatprep.subr.mxu0 0.0
      %1239 = vmatpush1.msra.mxu0 0.0
      %1240 = vmatprep.subr.mxu0 0.0
      %1241 = vmatpush1.msra.mxu0 0.0
      %1242 = vmatprep.subr.mxu0 0.0
      %1243 = vmatpush1.msra.mxu0 0.0
      %1244 = vmatprep.subr.mxu0 0.0
      %1245 = vmatpush1.msra.mxu0 0.0
      %1246 = vmatprep.subr.mxu0 0.0
      %1247 = vmatpush1.msra.mxu0 0.0
      %1248 = vmatprep.subr.mxu0 0.0
      %1249 = vmatpush1.msra.mxu0 0.0
      %1250 = vmatprep.subr.mxu0 0.0
      %1251 = vmatpush1.msra.mxu0 0.0
      %1252 = vmatprep.subr.mxu0 0.0
      %1253 = vmatpush1.msra.mxu0 0.0
      %1254 = vmatprep.subr.mxu0 0.0
      %1255 = vmatpush1.msra.mxu0 0.0
      %1256 = vmatprep.subr.mxu0 0.0
      %1257 = vmatpush1.msra.mxu0 0.0
      %1258 = vmatprep.subr.mxu0 0.0
      %1259 = vmatpush1.msra.mxu0 0.0
      %1260 = vmatprep.subr.mxu0 0.0
      %1261 = vmatpush1.msra.mxu0 0.0
      %1262 = vmatprep.subr.mxu0 0.0
      %1263 = vmatpush1.msra.mxu0 0.0
      %1264 = vmatprep.subr.mxu0 0.0
      %1265 = vmatpush1.msra.mxu0 0.0
      %1266 = vmatprep.subr.mxu0 0.0
      %1267 = vmatpush1.msra.mxu0 0.0
      %1268 = vmatprep.subr.mxu0 0.0
      %1269 = vmatpush1.msra.mxu0 0.0
      %1270 = vmatprep.subr.mxu0 0.0
      %1271 = vmatpush1.msra.mxu0 0.0
      %1272 = vmatprep.subr.mxu0 0.0
      %1273 = vmatpush1.msra.mxu0 0.0
      %1274 = vmatprep.subr.mxu0 0.0
      %1275 = vmatpush1.msra.mxu0 0.0
      %1276 = vmatprep.subr.mxu0 0.0
      %1277 = vmatpush1.msra.mxu0 0.0
      %1278 = vmatprep.subr.mxu0 0.0
      %1279 = vmatpush1.msra.mxu0 0.0
      %1280 = vmatprep.subr.mxu0 0.0
      %1281 = vmatpush1.msra.mxu0 0.0
      %1282 = vmatprep.subr.mxu0 0.0
      %1283 = vmatpush1.msra.mxu0 0.0
      %1284 = vmatprep.mubr.f32.mxu0 0.0
      %1285 = vmatmul.mubr.f32.gmra.mrb[0].mxu0 %v1218
      %v1286 = vpop.f32.mrb[0].mxu0
      %v1287 = vadd.f32 0.0, %v1286
      %v1288 = vpop.f32.mrb[0].mxu0
      %1289 = vdwg.mxu0
      %1290 = vrot.lane.b32.xlu0 %v770, 32
      %v1291 = vpop.permute.xlu0 %1290
      %v1292 = vsel %vm773, %v1291, 0
      %1294 = vmatprep.subr.mxu0 0.0
      %1295 = vmatpush1.msra.mxu0 %v771
      %1296 = vmatprep.subr.mxu0 0.0
      %1297 = vmatpush1.msra.mxu0 %v772
      %1298 = vmatprep.subr.mxu0 0.0
      %1299 = vmatpush1.msra.mxu0 0.0
      %1300 = vmatprep.subr.mxu0 0.0
      %1301 = vmatpush1.msra.mxu0 0.0
      %1302 = vmatprep.subr.mxu0 0.0
      %1303 = vmatpush1.msra.mxu0 0.0
      %1304 = vmatprep.subr.mxu0 0.0
      %1305 = vmatpush1.msra.mxu0 0.0
      %1306 = vmatprep.subr.mxu0 0.0
      %1307 = vmatpush1.msra.mxu0 0.0
      %1308 = vmatprep.subr.mxu0 0.0
      %1309 = vmatpush1.msra.mxu0 0.0
      %1310 = vmatprep.subr.mxu0 0.0
      %1311 = vmatpush1.msra.mxu0 0.0
      %1312 = vmatprep.subr.mxu0 0.0
      %1313 = vmatpush1.msra.mxu0 0.0
      %1314 = vmatprep.subr.mxu0 0.0
      %1315 = vmatpush1.msra.mxu0 0.0
      %1316 = vmatprep.subr.mxu0 0.0
      %1317 = vmatpush1.msra.mxu0 0.0
      %1318 = vmatprep.subr.mxu0 0.0
      %1319 = vmatpush1.msra.mxu0 0.0
      %1320 = vmatprep.subr.mxu0 0.0
      %1321 = vmatpush1.msra.mxu0 0.0
      %1322 = vmatprep.subr.mxu0 0.0
      %1323 = vmatpush1.msra.mxu0 0.0
      %1324 = vmatprep.subr.mxu0 0.0
      %1325 = vmatpush1.msra.mxu0 0.0
      %1326 = vmatprep.subr.mxu0 0.0
      %1327 = vmatpush1.msra.mxu0 0.0
      %1328 = vmatprep.subr.mxu0 0.0
      %1329 = vmatpush1.msra.mxu0 0.0
      %1330 = vmatprep.subr.mxu0 0.0
      %1331 = vmatpush1.msra.mxu0 0.0
      %1332 = vmatprep.subr.mxu0 0.0
      %1333 = vmatpush1.msra.mxu0 0.0
      %1334 = vmatprep.subr.mxu0 0.0
      %1335 = vmatpush1.msra.mxu0 0.0
      %1336 = vmatprep.subr.mxu0 0.0
      %1337 = vmatpush1.msra.mxu0 0.0
      %1338 = vmatprep.subr.mxu0 0.0
      %1339 = vmatpush1.msra.mxu0 0.0
      %1340 = vmatprep.subr.mxu0 0.0
      %1341 = vmatpush1.msra.mxu0 0.0
      %1342 = vmatprep.subr.mxu0 0.0
      %1343 = vmatpush1.msra.mxu0 0.0
      %1344 = vmatprep.subr.mxu0 0.0
      %1345 = vmatpush1.msra.mxu0 0.0
      %1346 = vmatprep.subr.mxu0 0.0
      %1347 = vmatpush1.msra.mxu0 0.0
      %1348 = vmatprep.subr.mxu0 0.0
      %1349 = vmatpush1.msra.mxu0 0.0
      %1350 = vmatprep.subr.mxu0 0.0
      %1351 = vmatpush1.msra.mxu0 0.0
      %1352 = vmatprep.subr.mxu0 0.0
      %1353 = vmatpush1.msra.mxu0 0.0
      %1354 = vmatprep.subr.mxu0 0.0
      %1355 = vmatpush1.msra.mxu0 0.0
      %1356 = vmatprep.subr.mxu0 0.0
      %1357 = vmatpush1.msra.mxu0 0.0
      %1358 = vmatprep.mubr.f32.mxu0 0.0
      %1359 = vmatmul.mubr.f32.gmra.mrb[0].mxu0 %v1292
      %v1360 = vpop.f32.mrb[0].mxu0
      %v1361 = vadd.f32 0.0, %v1360
      %v1362 = vpop.f32.mrb[0].mxu0
      %1363 = vdwg.mxu0
      %1365 = vrot.lane.b32.xlu0 %v918, 8
      %v1366 = vpop.permute.xlu0 %1365
      %1369 = vrot.lane.b32.xlu0 %v992, 16
      %v1370 = vpop.permute.xlu0 %1369
      %1373 = vrot.lane.b32.xlu0 %v1066, 24
      %v1374 = vpop.permute.xlu0 %1373
      %1377 = vrot.lane.b32.xlu0 %v1139, 32
      %v1378 = vpop.permute.xlu0 %1377
      %1381 = vrot.lane.b32.xlu0 %v1213, 40
      %v1382 = vpop.permute.xlu0 %1381
      %1385 = vrot.lane.b32.xlu0 %v1287, 48
      %v1386 = vpop.permute.xlu0 %1385
      %1389 = vrot.lane.b32.xlu0 %v1361, 56
      %v1390 = vpop.permute.xlu0 %1389
      %v1392 = vsel %vm388, %v844, %v1366
      %v1393 = vsel %vm773, %v1392, %v1370
      %vm1394 = vcmask 195584
      %v1395 = vsel %vm1394, %v1393, %v1374
      %vm1396 = vcmask 261120
      %v1397 = vsel %vm1396, %v1395, %v1378
      %vm1398 = vcmask 326656
      %v1399 = vsel %vm1398, %v1397, %v1382
      %vm1400 = vcmask 392192
      %v1401 = vsel %vm1400, %v1399, %v1386
      %vm1402 = vcmask 457728
      %v1403 = vsel %vm1402, %v1401, %v1390
      %1404 = vset.pattern.permute.xlu0 16
      %1405 = vperm.xlu0 %1404, %v223
      %v1406 = vpop.permute.xlu0 %1405
      %v1408 = vmul.f32 %v1406, %v1403
      %1409 = vset.pattern.permute.xlu0 17
      %1410 = vperm.xlu0 %1409, %v223
      %v1411 = vpop.permute.xlu0 %1410
      %v1413 = vadd.f32 %v1408, %v1411
      %vm1414 = vcmask 523264
      %1415 = vst.msk [vmem:[%s222] sm:$0xff] %vm1414, %v1413
      %p1416 = scmp.lt.s32.totalorder %s16, 1
      %s1417 = scalar_select %p1416, %s16, 1
      %s1418 = smul.addr %s1417, 8
      %s1419 = scalar_lea.vmem %s5, %s1418
      // Predicated region
      $region41: #{residual_downsample_sep.1} parent=39 // pred_check
        %p1420 = pneg %p144
      $region42: #{residual_downsample_sep.1} parent=39 // pred_check_branch
        %1422 = sbr.rel (%p1420) target = $region44
      $region43: #{residual_downsample_sep.1} parent=39 // pred_region
        _
      $region44: #{residual_downsample_sep.1} parent=39 // pred_fallthru
        _
    $region40: #{residual_downsample_sep.1} parent=5 // pred_fallthru
      _
    %p1423 = scmp.le.s32.totalorder 2, %s11
    // Predicated region
    $region45: #{residual_downsample_sep.1} parent=5 // pred_check
      %p1424 = pneg %p1423
    $region46: #{residual_downsample_sep.1} parent=5 // pred_check_branch
      %1426 = sbr.rel (%p1424) target = $region48
    $region47: #{residual_downsample_sep.1} parent=5 // pred_region
      %s1427 = ssub.s32 %s11, 2
      // Predicated region
      $region49: #{residual_downsample_sep.1} parent=47 // pred_check
        %p1428 = pneg %p150
      $region50: #{residual_downsample_sep.1} parent=47 // pred_check_branch
        %1430 = sbr.rel (%p1428) target = $region52
      $region51: #{residual_downsample_sep.1} parent=47 // pred_region
        %p1431 = scmp.lt.s32.totalorder %s17, 1
        %s1432 = scalar_select %p1431, %s17, 1
        %s1433 = smul.addr %s1432, 8
        %s1434 = scalar_lea.vmem %s5, %s1433
      $region52: #{residual_downsample_sep.1} parent=47 // pred_fallthru
        _
    $region48: #{residual_downsample_sep.1} parent=5 // pred_fallthru
      _
  $region6: #{residual_downsample_sep.1} parent=0 // loop_footer
    %s15 = sadd.s32 1, %s11
  $region7: #{residual_downsample_sep.1} parent=0 // loop_footer_branch
    %10 = sbr.rel target = $region3
  $region8: #{residual_downsample_sep.1} parent=0 // loop_exit
    _

</llo_original>
